<compile_context>
chip_gen: v7x
topology: tpu7x:2x2x1
jax: 0.10.0
libtpu: 0.0.40
codegen_flags: <defaults>
</compile_context>

<pallas_src>
import functools

import jax
import jax.numpy as jnp
from jax import lax
from jax.experimental import pallas as pl
from jax.experimental.pallas import tpu as pltpu


def _round_up(x, m):
    return (x + m - 1) // m * m


# -----------------------------------------------------------------------------
# Pallas kernel: fused embedding-gather (one-hot MXU matmul) + folded
# conv/mean-pool + ReLU + decoder, for one batch tile.
#   tok_ref  : (tb, T)        int32 token ids
#   wtok_ref : (T, Vp, H)     folded embed+conv+pool weight (bf16), Vp,H = 128-pad
#   b1_ref   : (1, H)  f32    per-branch conv biases (zero padded)
#   w2_ref   : (H, O)  bf16   decoder weight^T (O = num_classes padded to 128)
#   b2_ref   : (1, O)  f32    decoder bias (zero padded)
#   out_ref  : (tb, O) f32
# -----------------------------------------------------------------------------
def textcnn_kernel(tok_ref, wtok_ref, b1_ref, w2_ref, b2_ref, out_ref):
    tok = tok_ref[...]                                   # (tb, T) int32
    tb, seq = tok.shape
    v_pad = wtok_ref.shape[1]
    n_hid = wtok_ref.shape[2]

    iota_v = lax.broadcasted_iota(jnp.int32, (tb, v_pad), 1)
    h = jnp.zeros((tb, n_hid), jnp.float32)

    # In-kernel embedding gather: h[b, :] += Wtok[t, tok[b, t], :].
    # Implemented as one lane-dense one-hot matmul per time position so it runs
    # on the MXU (no HBM round-trip of a (B, T*2E) activation). Static unroll —
    # T is small and compile-time constant.
    for t in range(seq):
        onehot = jnp.where(tok[:, t:t + 1] == iota_v, 1.0, 0.0)
        onehot = onehot.astype(wtok_ref.dtype)           # bf16 MXU operand
        h = h + jnp.dot(onehot, wtok_ref[t],
                        preferred_element_type=jnp.float32)

    h = jnp.maximum(h + b1_ref[...], 0.0)                # conv bias + ReLU (f32)
    # Dropout(0.5) is an eval-mode identity.
    out_ref[...] = (jnp.dot(h.astype(w2_ref.dtype), w2_ref[...],
                            preferred_element_type=jnp.float32)
                    + b2_ref[...])


# -----------------------------------------------------------------------------
# One-time parameter preparation (fold embeddings + conv + mean-pool, pad lane
# dims, cast to bf16). Call once at init, NOT per forward call.
# -----------------------------------------------------------------------------
def prepare_params(params, seq_len, param_dtype=jnp.bfloat16):
    conv_ws = params["conv_w"]            # list of (c_out, c_in, k)  (PyTorch)
    conv_bs = params["conv_b"]            # list of (c_out,)
    dec_w = params["dec_w"]               # (num_classes, sum_c)
    dec_b = params["dec_b"]               # (num_classes,)

    T = int(seq_len)
    c_in = int(conv_ws[0].shape[1])       # = 2 * embed_size
    sum_c = sum(int(w.shape[0]) for w in conv_ws)
    n_cls = int(dec_w.shape[0])
    n_hid = _round_up(sum_c, 128)         # lane-dense hidden width
    n_out = _round_up(n_cls, 128)         # lane-dense output width

    # Fold Conv1d (valid, cross-correlation) + AdaptiveAvgPool1d(1) == mean over
    # the L = T-k+1 valid positions into W1fold[t, c, h]. Exact because the
    # ReLU is applied AFTER the (linear) pool.
    w1 = jnp.zeros((T, c_in, n_hid), jnp.float32)
    b1 = jnp.zeros((1, n_hid), jnp.float32)
    off = 0
    for w, b in zip(conv_ws, conv_bs):
        c_out, _, k = (int(s) for s in w.shape)
        L = T - k + 1
        wk = jnp.transpose(w, (2, 1, 0)).astype(jnp.float32) / L   # (k, c_in, c_out)
        for j in range(k):
            # time positions s = j .. j+L-1 see tap j of this branch
            w1 = w1.at[j:j + L, :, off:off + c_out].add(wk[j][None])
        b1 = b1.at[0, off:off + c_out].set(b.astype(jnp.float32))
        off += c_out

    # torch.cat((emb(x), const_emb(x)), dim=2) == gather from the pre-concatenated
    # table; fold that table straight into the per-position weight so the kernel
    # only needs token ids: Wtok[t, v, :] = table[v, :] @ W1fold[t].
    table = jnp.concatenate([params["embedding"],
                             params["constant_embedding"]],
                            axis=1).astype(jnp.float32)            # (V, 2E)
    V = int(table.shape[0])
    v_pad = _round_up(V, 128)            # lane-dense one-hot / MXU contraction dim
    wtok = jnp.einsum("vc,tch->tvh", table, w1)                    # (T, V, H)
    wtok_pad = jnp.zeros((T, v_pad, n_hid), jnp.float32)
    wtok_pad = wtok_pad.at[:, :V, :].set(wtok)

    # Decoder, padded to a 128-wide output slab (unmasked stores in-kernel).
    w2 = jnp.zeros((n_hid, n_out), jnp.float32)
    w2 = w2.at[:sum_c, :n_cls].set(jnp.transpose(dec_w).astype(jnp.float32))
    b2 = jnp.zeros((1, n_out), jnp.float32)
    b2 = b2.at[0, :n_cls].set(dec_b.astype(jnp.float32))

    prep = {
        "wtok": wtok_pad.astype(param_dtype),   # bf16 halves HBM/VMEM traffic
        "b1": b1,                               # biases & elementwise path stay f32
        "w2": w2.astype(param_dtype),
        "b2": b2,
    }
    return prep, n_cls


# -----------------------------------------------------------------------------
# Jitted forward wrapper: batch padding/tiling + the fused Pallas kernel over a
# batch-parallel grid. The only per-call HBM traffic for activations is the
# int32 token ids in and the (B, 128) logit slab out.
# -----------------------------------------------------------------------------
@functools.partial(jax.jit, static_argnames=("num_classes", "batch_block"))
def textcnn_forward(tokens, prep, *, num_classes=2, batch_block=512):
    wtok, b1, w2, b2 = prep["wtok"], prep["b1"], prep["w2"], prep["b2"]
    B, T = tokens.shape
    Tw, v_pad, n_hid = wtok.shape
    n_out = w2.shape[1]

    # Batch tile: multiple of 8 (sublane); pad B up to a multiple of the tile
    # instead of collapsing to one giant block (keeps the pipelined grid and a
    # bounded per-tile VMEM footprint). If the grid would have a single step,
    # halve the tile so v7x's 2 TensorCores both get work.
    tb = min(batch_block, _round_up(B, 8))
    tb = _round_up(tb, 8)
    B_pad = _round_up(B, tb)
    if B_pad // tb < 2 and B_pad >= 16:
        tb = _round_up(B_pad // 2, 8)
        B_pad = _round_up(B, tb)
    if B_pad != B:
        tokens = jnp.pad(tokens, ((0, B_pad - B), (0, 0)))   # token 0 rows, discarded
    grid = (B_pad // tb,)

    # Honest advisory cost: bf16 weight bytes + int32 token bytes + f32 outputs.
    w_item = jnp.dtype(wtok.dtype).itemsize
    flops = 2 * B_pad * T * v_pad * n_hid + 2 * B_pad * n_hid * n_out
    bytes_accessed = (B_pad * T * 4                               # token ids
                      + (wtok.size + w2.size) * w_item            # bf16 weights
                      + (b1.size + b2.size) * 4                   # f32 biases
                      + B_pad * n_out * 4)                        # f32 logits

    # VMEM budget: double-buffered token/out tiles + resident weights + temps.
    # Cap at 64 MiB (v7x physical); v5e/v6e can raise to ~96 MiB for bigger tiles.
    est_vmem = (2 * tb * T * 4 + 2 * tb * n_out * 4
                + 2 * (wtok.size + w2.size) * w_item
                + 2 * (b1.size + b2.size) * 4
                + 4 * tb * (n_hid + v_pad) * 4)
    vmem_limit = int(min(64 * 1024 * 1024,
                         max(32 * 1024 * 1024, 2 * est_vmem)))

    out = pl.pallas_call(
        textcnn_kernel,
        out_shape=jax.ShapeDtypeStruct((B_pad, n_out), jnp.float32),
        grid=grid,
        in_specs=[
            pl.BlockSpec((tb, T), lambda i: (i, 0)),            # tokens: batch-tiled
            pl.BlockSpec((Tw, v_pad, n_hid), lambda i: (0, 0, 0)),  # weights resident
            pl.BlockSpec((1, n_hid), lambda i: (0, 0)),
            pl.BlockSpec((n_hid, n_out), lambda i: (0, 0)),
            pl.BlockSpec((1, n_out), lambda i: (0, 0)),
        ],
        out_specs=pl.BlockSpec((tb, n_out), lambda i: (i, 0)),  # lane-dense stores
        compiler_params=pltpu.CompilerParams(
            dimension_semantics=("parallel",),                  # megacore-shardable
            vmem_limit_bytes=vmem_limit,
        ),
        cost_estimate=pl.CostEstimate(flops=flops, transcendentals=0,
                                      bytes_accessed=bytes_accessed),
    )(tokens, wtok, b1, w2, b2)

    return out[:B, :num_classes]          # strip batch + lane padding (fused slice)


# -----------------------------------------------------------------------------
# Pure-JAX reference following the original PyTorch graph (gather, concat, conv
# per branch, mean-pool, relu, concat, linear) — verifies the folding is exact.
# -----------------------------------------------------------------------------
def textcnn_reference(tokens, params):
    e1 = jnp.take(params["embedding"], tokens, axis=0)
    e2 = jnp.take(params["constant_embedding"], tokens, axis=0)
    emb = jnp.concatenate([e1, e2], axis=-1)           # (B, T, 2E)
    x = jnp.transpose(emb, (0, 2, 1))                  # (B, 2E, T) == NCW

    feats = []
    for w, b in zip(params["conv_w"], params["conv_b"]):
        y = lax.conv_general_dilated(
            x, w, window_strides=(1,), padding="VALID",
            dimension_numbers=("NCH", "OIH", "NCH"))   # (B, C_out, L)
        y = y + b[None, :, None]
        y = jnp.mean(y, axis=-1)                       # AdaptiveAvgPool1d(1)
        feats.append(jnp.maximum(y, 0.0))              # ReLU
    enc = jnp.concatenate(feats, axis=1)               # (B, sum_c)
    return enc @ params["dec_w"].T + params["dec_b"]   # (B, num_classes)


# -----------------------------------------------------------------------------
# Deterministic synthetic parameters (shapes per TextCNN.__init__).
# -----------------------------------------------------------------------------
def make_params(key, vocab_size, embed_size, kernel_sizes, num_channels):
    keys = jax.random.split(key, 4 + 2 * len(kernel_sizes))
    params = {
        "embedding": jax.random.normal(keys[0], (vocab_size, embed_size),
                                       jnp.float32),
        "constant_embedding": jax.random.normal(keys[1],
                                                (vocab_size, embed_size),
                                                jnp.float32),
        "dec_w": 0.1 * jax.random.normal(keys[2], (2, sum(num_channels)),
                                         jnp.float32),
        "dec_b": 0.1 * jax.random.normal(keys[3], (2,), jnp.float32),
        "conv_w": [],
        "conv_b": [],
    }
    for idx, (c, k) in enumerate(zip(num_channels, kernel_sizes)):
        wk = keys[4 + 2 * idx]
        bk = keys[5 + 2 * idx]
        params["conv_w"].append(
            0.1 * jax.random.normal(wk, (c, 2 * embed_size, k), jnp.float32))
        params["conv_b"].append(
            0.1 * jax.random.normal(bk, (c,), jnp.float32))
    return params


if __name__ == "__main__":
    vocab_size = 50
    embed_size = 16            # -> conv input channels = 32
    kernel_sizes = (3, 4, 5)
    num_channels = (8, 8, 8)   # sum = 24 (padded to 128 in the kernel)
    batch, seq_len = 16, 16    # tile heuristic picks tb=8 -> grid=(2,)

    root = jax.random.PRNGKey(0)
    k_tok, k_par = jax.random.split(root)
    tokens = jax.random.randint(k_tok, (batch, seq_len), 0, vocab_size,
                                dtype=jnp.int32)
    params = make_params(k_par, vocab_size, embed_size, kernel_sizes,
                         num_channels)

    # One-time weight folding / padding / bf16 cast (not per call).
    prep, num_classes = prepare_params(params, seq_len)

    out = textcnn_forward(tokens, prep, num_classes=num_classes)
    out = jax.block_until_ready(out)

    ref = jax.block_until_ready(textcnn_reference(tokens, params))
    assert out.shape == (batch, num_classes) and out.dtype == jnp.float32
    # bf16 params -> loosened (but still tight vs. logit scale ~0.1-0.5) tolerance.
    assert jnp.allclose(out, ref, rtol=3e-2, atol=3e-2), (out, ref)

    print("KERNEL_OK")
</pallas_src>

<mosaic_0001>
module attributes {stable_mosaic.version = 11 : i64} {
  func.func @textcnn_kernel(%arg0: i32, %arg1: memref<8x16xi32, #tpu.memory_space<vmem>>, %arg2: memref<16x128x128xbf16, #tpu.memory_space<vmem>>, %arg3: memref<1x128xf32, #tpu.memory_space<vmem>>, %arg4: memref<128x128xbf16, #tpu.memory_space<vmem>>, %arg5: memref<1x128xf32, #tpu.memory_space<vmem>>, %arg6: memref<8x128xf32, #tpu.memory_space<vmem>>) attributes {dimension_semantics = [#tpu.dimension_semantics<parallel>], iteration_bounds = array<i64: 2>, scalar_prefetch = 0 : i64, scratch_operands = 0 : i64, tpu.core_type = #tpu.core_type<tc>, window_params = [{transform_indices = @transform_0, window_bounds = array<i64: 8, 16>}, {pipeline_mode = #tpu.pipeline_mode<synchronous>, transform_indices = @transform_1, window_bounds = array<i64: 16, 128, 128>}, {pipeline_mode = #tpu.pipeline_mode<synchronous>, transform_indices = @transform_2, window_bounds = array<i64: 1, 128>}, {pipeline_mode = #tpu.pipeline_mode<synchronous>, transform_indices = @transform_3, window_bounds = array<i64: 128, 128>}, {pipeline_mode = #tpu.pipeline_mode<synchronous>, transform_indices = @transform_4, window_bounds = array<i64: 1, 128>}, {transform_indices = @transform_5, window_bounds = array<i64: 8, 128>}]} {
    %c0 = arith.constant 0 : index
    %c0_0 = arith.constant 0 : index
    %0 = vector.load %arg1[%c0, %c0_0] : memref<8x16xi32, #tpu.memory_space<vmem>>, vector<8x16xi32>
    %1 = tpu.iota {dimensions = array<i32: 1>} : vector<8x128xi32>
    %cst = arith.constant 0.000000e+00 : f32
    %2 = vector.broadcast %cst : f32 to vector<8x128xf32>
    %3 = vector.extract_strided_slice %0 {offsets = [0, 0], sizes = [8, 1], strides = [1, 1]} : vector<8x16xi32> to vector<8x1xi32>
    %4 = vector.broadcast %3 : vector<8x1xi32> to vector<8x128xi32>
    %5 = arith.cmpi eq, %4, %1 : vector<8x128xi32>
    %cst_1 = arith.constant 1.000000e+00 : f32
    %cst_2 = arith.constant 0.000000e+00 : f32
    %6 = vector.broadcast %cst_1 : f32 to vector<8x128xf32>
    %7 = vector.broadcast %cst_2 : f32 to vector<8x128xf32>
    %8 = arith.select %5, %6, %7 : vector<8x128xi1>, vector<8x128xf32>
    %9 = arith.truncf %8 : vector<8x128xf32> to vector<8x128xbf16>
    %c0_3 = arith.constant 0 : index
    %c0_4 = arith.constant 0 : index
    %c0_5 = arith.constant 0 : index
    %10 = vector.load %arg2[%c0_3, %c0_4, %c0_5] : memref<16x128x128xbf16, #tpu.memory_space<vmem>>, vector<1x128x128xbf16>
    %11 = vector.shape_cast %10 : vector<1x128x128xbf16> to vector<128x128xbf16>
    %cst_6 = arith.constant dense<0.000000e+00> : vector<8x128xf32>
    %12 = tpu.matmul %9, %11, %cst_6 {dimension_numbers = #tpu.dot_dimension_numbers<[1], [0], [0], [1], [0, 0, 1, 1], [], []>} : vector<8x128xbf16>, vector<128x128xbf16>, vector<8x128xf32> -> vector<8x128xf32>
    %13 = arith.addf %2, %12 : vector<8x128xf32>
    %14 = vector.extract_strided_slice %0 {offsets = [0, 1], sizes = [8, 1], strides = [1, 1]} : vector<8x16xi32> to vector<8x1xi32>
    %15 = vector.broadcast %14 : vector<8x1xi32> to vector<8x128xi32>
    %16 = arith.cmpi eq, %15, %1 : vector<8x128xi32>
    %cst_7 = arith.constant 1.000000e+00 : f32
    %cst_8 = arith.constant 0.000000e+00 : f32
    %17 = vector.broadcast %cst_7 : f32 to vector<8x128xf32>
    %18 = vector.broadcast %cst_8 : f32 to vector<8x128xf32>
    %19 = arith.select %16, %17, %18 : vector<8x128xi1>, vector<8x128xf32>
    %20 = arith.truncf %19 : vector<8x128xf32> to vector<8x128xbf16>
    %c1 = arith.constant 1 : index
    %c0_9 = arith.constant 0 : index
    %c0_10 = arith.constant 0 : index
    %21 = vector.load %arg2[%c1, %c0_9, %c0_10] : memref<16x128x128xbf16, #tpu.memory_space<vmem>>, vector<1x128x128xbf16>
    %22 = vector.shape_cast %21 : vector<1x128x128xbf16> to vector<128x128xbf16>
    %cst_11 = arith.constant dense<0.000000e+00> : vector<8x128xf32>
    %23 = tpu.matmul %20, %22, %cst_11 {dimension_numbers = #tpu.dot_dimension_numbers<[1], [0], [0], [1], [0, 0, 1, 1], [], []>} : vector<8x128xbf16>, vector<128x128xbf16>, vector<8x128xf32> -> vector<8x128xf32>
    %24 = arith.addf %13, %23 : vector<8x128xf32>
    %25 = vector.extract_strided_slice %0 {offsets = [0, 2], sizes = [8, 1], strides = [1, 1]} : vector<8x16xi32> to vector<8x1xi32>
    %26 = vector.broadcast %25 : vector<8x1xi32> to vector<8x128xi32>
    %27 = arith.cmpi eq, %26, %1 : vector<8x128xi32>
    %cst_12 = arith.constant 1.000000e+00 : f32
    %cst_13 = arith.constant 0.000000e+00 : f32
    %28 = vector.broadcast %cst_12 : f32 to vector<8x128xf32>
    %29 = vector.broadcast %cst_13 : f32 to vector<8x128xf32>
    %30 = arith.select %27, %28, %29 : vector<8x128xi1>, vector<8x128xf32>
    %31 = arith.truncf %30 : vector<8x128xf32> to vector<8x128xbf16>
    %c2 = arith.constant 2 : index
    %c0_14 = arith.constant 0 : index
    %c0_15 = arith.constant 0 : index
    %32 = vector.load %arg2[%c2, %c0_14, %c0_15] : memref<16x128x128xbf16, #tpu.memory_space<vmem>>, vector<1x128x128xbf16>
    %33 = vector.shape_cast %32 : vector<1x128x128xbf16> to vector<128x128xbf16>
    %cst_16 = arith.constant dense<0.000000e+00> : vector<8x128xf32>
    %34 = tpu.matmul %31, %33, %cst_16 {dimension_numbers = #tpu.dot_dimension_numbers<[1], [0], [0], [1], [0, 0, 1, 1], [], []>} : vector<8x128xbf16>, vector<128x128xbf16>, vector<8x128xf32> -> vector<8x128xf32>
    %35 = arith.addf %24, %34 : vector<8x128xf32>
    %36 = vector.extract_strided_slice %0 {offsets = [0, 3], sizes = [8, 1], strides = [1, 1]} : vector<8x16xi32> to vector<8x1xi32>
    %37 = vector.broadcast %36 : vector<8x1xi32> to vector<8x128xi32>
    %38 = arith.cmpi eq, %37, %1 : vector<8x128xi32>
    %cst_17 = arith.constant 1.000000e+00 : f32
    %cst_18 = arith.constant 0.000000e+00 : f32
    %39 = vector.broadcast %cst_17 : f32 to vector<8x128xf32>
    %40 = vector.broadcast %cst_18 : f32 to vector<8x128xf32>
    %41 = arith.select %38, %39, %40 : vector<8x128xi1>, vector<8x128xf32>
    %42 = arith.truncf %41 : vector<8x128xf32> to vector<8x128xbf16>
    %c3 = arith.constant 3 : index
    %c0_19 = arith.constant 0 : index
    %c0_20 = arith.constant 0 : index
    %43 = vector.load %arg2[%c3, %c0_19, %c0_20] : memref<16x128x128xbf16, #tpu.memory_space<vmem>>, vector<1x128x128xbf16>
    %44 = vector.shape_cast %43 : vector<1x128x128xbf16> to vector<128x128xbf16>
    %cst_21 = arith.constant dense<0.000000e+00> : vector<8x128xf32>
    %45 = tpu.matmul %42, %44, %cst_21 {dimension_numbers = #tpu.dot_dimension_numbers<[1], [0], [0], [1], [0, 0, 1, 1], [], []>} : vector<8x128xbf16>, vector<128x128xbf16>, vector<8x128xf32> -> vector<8x128xf32>
    %46 = arith.addf %35, %45 : vector<8x128xf32>
    %47 = vector.extract_strided_slice %0 {offsets = [0, 4], sizes = [8, 1], strides = [1, 1]} : vector<8x16xi32> to vector<8x1xi32>
    %48 = vector.broadcast %47 : vector<8x1xi32> to vector<8x128xi32>
    %49 = arith.cmpi eq, %48, %1 : vector<8x128xi32>
    %cst_22 = arith.constant 1.000000e+00 : f32
    %cst_23 = arith.constant 0.000000e+00 : f32
    %50 = vector.broadcast %cst_22 : f32 to vector<8x128xf32>
    %51 = vector.broadcast %cst_23 : f32 to vector<8x128xf32>
    %52 = arith.select %49, %50, %51 : vector<8x128xi1>, vector<8x128xf32>
    %53 = arith.truncf %52 : vector<8x128xf32> to vector<8x128xbf16>
    %c4 = arith.constant 4 : index
    %c0_24 = arith.constant 0 : index
    %c0_25 = arith.constant 0 : index
    %54 = vector.load %arg2[%c4, %c0_24, %c0_25] : memref<16x128x128xbf16, #tpu.memory_space<vmem>>, vector<1x128x128xbf16>
    %55 = vector.shape_cast %54 : vector<1x128x128xbf16> to vector<128x128xbf16>
    %cst_26 = arith.constant dense<0.000000e+00> : vector<8x128xf32>
    %56 = tpu.matmul %53, %55, %cst_26 {dimension_numbers = #tpu.dot_dimension_numbers<[1], [0], [0], [1], [0, 0, 1, 1], [], []>} : vector<8x128xbf16>, vector<128x128xbf16>, vector<8x128xf32> -> vector<8x128xf32>
    %57 = arith.addf %46, %56 : vector<8x128xf32>
    %58 = vector.extract_strided_slice %0 {offsets = [0, 5], sizes = [8, 1], strides = [1, 1]} : vector<8x16xi32> to vector<8x1xi32>
    %59 = vector.broadcast %58 : vector<8x1xi32> to vector<8x128xi32>
    %60 = arith.cmpi eq, %59, %1 : vector<8x128xi32>
    %cst_27 = arith.constant 1.000000e+00 : f32
    %cst_28 = arith.constant 0.000000e+00 : f32
    %61 = vector.broadcast %cst_27 : f32 to vector<8x128xf32>
    %62 = vector.broadcast %cst_28 : f32 to vector<8x128xf32>
    %63 = arith.select %60, %61, %62 : vector<8x128xi1>, vector<8x128xf32>
    %64 = arith.truncf %63 : vector<8x128xf32> to vector<8x128xbf16>
    %c5 = arith.constant 5 : index
    %c0_29 = arith.constant 0 : index
    %c0_30 = arith.constant 0 : index
    %65 = vector.load %arg2[%c5, %c0_29, %c0_30] : memref<16x128x128xbf16, #tpu.memory_space<vmem>>, vector<1x128x128xbf16>
    %66 = vector.shape_cast %65 : vector<1x128x128xbf16> to vector<128x128xbf16>
    %cst_31 = arith.constant dense<0.000000e+00> : vector<8x128xf32>
    %67 = tpu.matmul %64, %66, %cst_31 {dimension_numbers = #tpu.dot_dimension_numbers<[1], [0], [0], [1], [0, 0, 1, 1], [], []>} : vector<8x128xbf16>, vector<128x128xbf16>, vector<8x128xf32> -> vector<8x128xf32>
    %68 = arith.addf %57, %67 : vector<8x128xf32>
    %69 = vector.extract_strided_slice %0 {offsets = [0, 6], sizes = [8, 1], strides = [1, 1]} : vector<8x16xi32> to vector<8x1xi32>
    %70 = vector.broadcast %69 : vector<8x1xi32> to vector<8x128xi32>
    %71 = arith.cmpi eq, %70, %1 : vector<8x128xi32>
    %cst_32 = arith.constant 1.000000e+00 : f32
    %cst_33 = arith.constant 0.000000e+00 : f32
    %72 = vector.broadcast %cst_32 : f32 to vector<8x128xf32>
    %73 = vector.broadcast %cst_33 : f32 to vector<8x128xf32>
    %74 = arith.select %71, %72, %73 : vector<8x128xi1>, vector<8x128xf32>
    %75 = arith.truncf %74 : vector<8x128xf32> to vector<8x128xbf16>
    %c6 = arith.constant 6 : index
    %c0_34 = arith.constant 0 : index
    %c0_35 = arith.constant 0 : index
    %76 = vector.load %arg2[%c6, %c0_34, %c0_35] : memref<16x128x128xbf16, #tpu.memory_space<vmem>>, vector<1x128x128xbf16>
    %77 = vector.shape_cast %76 : vector<1x128x128xbf16> to vector<128x128xbf16>
    %cst_36 = arith.constant dense<0.000000e+00> : vector<8x128xf32>
    %78 = tpu.matmul %75, %77, %cst_36 {dimension_numbers = #tpu.dot_dimension_numbers<[1], [0], [0], [1], [0, 0, 1, 1], [], []>} : vector<8x128xbf16>, vector<128x128xbf16>, vector<8x128xf32> -> vector<8x128xf32>
    %79 = arith.addf %68, %78 : vector<8x128xf32>
    %80 = vector.extract_strided_slice %0 {offsets = [0, 7], sizes = [8, 1], strides = [1, 1]} : vector<8x16xi32> to vector<8x1xi32>
    %81 = vector.broadcast %80 : vector<8x1xi32> to vector<8x128xi32>
    %82 = arith.cmpi eq, %81, %1 : vector<8x128xi32>
    %cst_37 = arith.constant 1.000000e+00 : f32
    %cst_38 = arith.constant 0.000000e+00 : f32
    %83 = vector.broadcast %cst_37 : f32 to vector<8x128xf32>
    %84 = vector.broadcast %cst_38 : f32 to vector<8x128xf32>
    %85 = arith.select %82, %83, %84 : vector<8x128xi1>, vector<8x128xf32>
    %86 = arith.truncf %85 : vector<8x128xf32> to vector<8x128xbf16>
    %c7 = arith.constant 7 : index
    %c0_39 = arith.constant 0 : index
    %c0_40 = arith.constant 0 : index
    %87 = vector.load %arg2[%c7, %c0_39, %c0_40] : memref<16x128x128xbf16, #tpu.memory_space<vmem>>, vector<1x128x128xbf16>
    %88 = vector.shape_cast %87 : vector<1x128x128xbf16> to vector<128x128xbf16>
    %cst_41 = arith.constant dense<0.000000e+00> : vector<8x128xf32>
    %89 = tpu.matmul %86, %88, %cst_41 {dimension_numbers = #tpu.dot_dimension_numbers<[1], [0], [0], [1], [0, 0, 1, 1], [], []>} : vector<8x128xbf16>, vector<128x128xbf16>, vector<8x128xf32> -> vector<8x128xf32>
    %90 = arith.addf %79, %89 : vector<8x128xf32>
    %91 = vector.extract_strided_slice %0 {offsets = [0, 8], sizes = [8, 1], strides = [1, 1]} : vector<8x16xi32> to vector<8x1xi32>
    %92 = vector.broadcast %91 : vector<8x1xi32> to vector<8x128xi32>
    %93 = arith.cmpi eq, %92, %1 : vector<8x128xi32>
    %cst_42 = arith.constant 1.000000e+00 : f32
    %cst_43 = arith.constant 0.000000e+00 : f32
    %94 = vector.broadcast %cst_42 : f32 to vector<8x128xf32>
    %95 = vector.broadcast %cst_43 : f32 to vector<8x128xf32>
    %96 = arith.select %93, %94, %95 : vector<8x128xi1>, vector<8x128xf32>
    %97 = arith.truncf %96 : vector<8x128xf32> to vector<8x128xbf16>
    %c8 = arith.constant 8 : index
    %c0_44 = arith.constant 0 : index
    %c0_45 = arith.constant 0 : index
    %98 = vector.load %arg2[%c8, %c0_44, %c0_45] : memref<16x128x128xbf16, #tpu.memory_space<vmem>>, vector<1x128x128xbf16>
    %99 = vector.shape_cast %98 : vector<1x128x128xbf16> to vector<128x128xbf16>
    %cst_46 = arith.constant dense<0.000000e+00> : vector<8x128xf32>
    %100 = tpu.matmul %97, %99, %cst_46 {dimension_numbers = #tpu.dot_dimension_numbers<[1], [0], [0], [1], [0, 0, 1, 1], [], []>} : vector<8x128xbf16>, vector<128x128xbf16>, vector<8x128xf32> -> vector<8x128xf32>
    %101 = arith.addf %90, %100 : vector<8x128xf32>
    %102 = vector.extract_strided_slice %0 {offsets = [0, 9], sizes = [8, 1], strides = [1, 1]} : vector<8x16xi32> to vector<8x1xi32>
    %103 = vector.broadcast %102 : vector<8x1xi32> to vector<8x128xi32>
    %104 = arith.cmpi eq, %103, %1 : vector<8x128xi32>
    %cst_47 = arith.constant 1.000000e+00 : f32
    %cst_48 = arith.constant 0.000000e+00 : f32
    %105 = vector.broadcast %cst_47 : f32 to vector<8x128xf32>
    %106 = vector.broadcast %cst_48 : f32 to vector<8x128xf32>
    %107 = arith.select %104, %105, %106 : vector<8x128xi1>, vector<8x128xf32>
    %108 = arith.truncf %107 : vector<8x128xf32> to vector<8x128xbf16>
    %c9 = arith.constant 9 : index
    %c0_49 = arith.constant 0 : index
    %c0_50 = arith.constant 0 : index
    %109 = vector.load %arg2[%c9, %c0_49, %c0_50] : memref<16x128x128xbf16, #tpu.memory_space<vmem>>, vector<1x128x128xbf16>
    %110 = vector.shape_cast %109 : vector<1x128x128xbf16> to vector<128x128xbf16>
    %cst_51 = arith.constant dense<0.000000e+00> : vector<8x128xf32>
    %111 = tpu.matmul %108, %110, %cst_51 {dimension_numbers = #tpu.dot_dimension_numbers<[1], [0], [0], [1], [0, 0, 1, 1], [], []>} : vector<8x128xbf16>, vector<128x128xbf16>, vector<8x128xf32> -> vector<8x128xf32>
    %112 = arith.addf %101, %111 : vector<8x128xf32>
    %113 = vector.extract_strided_slice %0 {offsets = [0, 10], sizes = [8, 1], strides = [1, 1]} : vector<8x16xi32> to vector<8x1xi32>
    %114 = vector.broadcast %113 : vector<8x1xi32> to vector<8x128xi32>
    %115 = arith.cmpi eq, %114, %1 : vector<8x128xi32>
    %cst_52 = arith.constant 1.000000e+00 : f32
    %cst_53 = arith.constant 0.000000e+00 : f32
    %116 = vector.broadcast %cst_52 : f32 to vector<8x128xf32>
    %117 = vector.broadcast %cst_53 : f32 to vector<8x128xf32>
    %118 = arith.select %115, %116, %117 : vector<8x128xi1>, vector<8x128xf32>
    %119 = arith.truncf %118 : vector<8x128xf32> to vector<8x128xbf16>
    %c10 = arith.constant 10 : index
    %c0_54 = arith.constant 0 : index
    %c0_55 = arith.constant 0 : index
    %120 = vector.load %arg2[%c10, %c0_54, %c0_55] : memref<16x128x128xbf16, #tpu.memory_space<vmem>>, vector<1x128x128xbf16>
    %121 = vector.shape_cast %120 : vector<1x128x128xbf16> to vector<128x128xbf16>
    %cst_56 = arith.constant dense<0.000000e+00> : vector<8x128xf32>
    %122 = tpu.matmul %119, %121, %cst_56 {dimension_numbers = #tpu.dot_dimension_numbers<[1], [0], [0], [1], [0, 0, 1, 1], [], []>} : vector<8x128xbf16>, vector<128x128xbf16>, vector<8x128xf32> -> vector<8x128xf32>
    %123 = arith.addf %112, %122 : vector<8x128xf32>
    %124 = vector.extract_strided_slice %0 {offsets = [0, 11], sizes = [8, 1], strides = [1, 1]} : vector<8x16xi32> to vector<8x1xi32>
    %125 = vector.broadcast %124 : vector<8x1xi32> to vector<8x128xi32>
    %126 = arith.cmpi eq, %125, %1 : vector<8x128xi32>
    %cst_57 = arith.constant 1.000000e+00 : f32
    %cst_58 = arith.constant 0.000000e+00 : f32
    %127 = vector.broadcast %cst_57 : f32 to vector<8x128xf32>
    %128 = vector.broadcast %cst_58 : f32 to vector<8x128xf32>
    %129 = arith.select %126, %127, %128 : vector<8x128xi1>, vector<8x128xf32>
    %130 = arith.truncf %129 : vector<8x128xf32> to vector<8x128xbf16>
    %c11 = arith.constant 11 : index
    %c0_59 = arith.constant 0 : index
    %c0_60 = arith.constant 0 : index
    %131 = vector.load %arg2[%c11, %c0_59, %c0_60] : memref<16x128x128xbf16, #tpu.memory_space<vmem>>, vector<1x128x128xbf16>
    %132 = vector.shape_cast %131 : vector<1x128x128xbf16> to vector<128x128xbf16>
    %cst_61 = arith.constant dense<0.000000e+00> : vector<8x128xf32>
    %133 = tpu.matmul %130, %132, %cst_61 {dimension_numbers = #tpu.dot_dimension_numbers<[1], [0], [0], [1], [0, 0, 1, 1], [], []>} : vector<8x128xbf16>, vector<128x128xbf16>, vector<8x128xf32> -> vector<8x128xf32>
    %134 = arith.addf %123, %133 : vector<8x128xf32>
    %135 = vector.extract_strided_slice %0 {offsets = [0, 12], sizes = [8, 1], strides = [1, 1]} : vector<8x16xi32> to vector<8x1xi32>
    %136 = vector.broadcast %135 : vector<8x1xi32> to vector<8x128xi32>
    %137 = arith.cmpi eq, %136, %1 : vector<8x128xi32>
    %cst_62 = arith.constant 1.000000e+00 : f32
    %cst_63 = arith.constant 0.000000e+00 : f32
    %138 = vector.broadcast %cst_62 : f32 to vector<8x128xf32>
    %139 = vector.broadcast %cst_63 : f32 to vector<8x128xf32>
    %140 = arith.select %137, %138, %139 : vector<8x128xi1>, vector<8x128xf32>
    %141 = arith.truncf %140 : vector<8x128xf32> to vector<8x128xbf16>
    %c12 = arith.constant 12 : index
    %c0_64 = arith.constant 0 : index
    %c0_65 = arith.constant 0 : index
    %142 = vector.load %arg2[%c12, %c0_64, %c0_65] : memref<16x128x128xbf16, #tpu.memory_space<vmem>>, vector<1x128x128xbf16>
    %143 = vector.shape_cast %142 : vector<1x128x128xbf16> to vector<128x128xbf16>
    %cst_66 = arith.constant dense<0.000000e+00> : vector<8x128xf32>
    %144 = tpu.matmul %141, %143, %cst_66 {dimension_numbers = #tpu.dot_dimension_numbers<[1], [0], [0], [1], [0, 0, 1, 1], [], []>} : vector<8x128xbf16>, vector<128x128xbf16>, vector<8x128xf32> -> vector<8x128xf32>
    %145 = arith.addf %134, %144 : vector<8x128xf32>
    %146 = vector.extract_strided_slice %0 {offsets = [0, 13], sizes = [8, 1], strides = [1, 1]} : vector<8x16xi32> to vector<8x1xi32>
    %147 = vector.broadcast %146 : vector<8x1xi32> to vector<8x128xi32>
    %148 = arith.cmpi eq, %147, %1 : vector<8x128xi32>
    %cst_67 = arith.constant 1.000000e+00 : f32
    %cst_68 = arith.constant 0.000000e+00 : f32
    %149 = vector.broadcast %cst_67 : f32 to vector<8x128xf32>
    %150 = vector.broadcast %cst_68 : f32 to vector<8x128xf32>
    %151 = arith.select %148, %149, %150 : vector<8x128xi1>, vector<8x128xf32>
    %152 = arith.truncf %151 : vector<8x128xf32> to vector<8x128xbf16>
    %c13 = arith.constant 13 : index
    %c0_69 = arith.constant 0 : index
    %c0_70 = arith.constant 0 : index
    %153 = vector.load %arg2[%c13, %c0_69, %c0_70] : memref<16x128x128xbf16, #tpu.memory_space<vmem>>, vector<1x128x128xbf16>
    %154 = vector.shape_cast %153 : vector<1x128x128xbf16> to vector<128x128xbf16>
    %cst_71 = arith.constant dense<0.000000e+00> : vector<8x128xf32>
    %155 = tpu.matmul %152, %154, %cst_71 {dimension_numbers = #tpu.dot_dimension_numbers<[1], [0], [0], [1], [0, 0, 1, 1], [], []>} : vector<8x128xbf16>, vector<128x128xbf16>, vector<8x128xf32> -> vector<8x128xf32>
    %156 = arith.addf %145, %155 : vector<8x128xf32>
    %157 = vector.extract_strided_slice %0 {offsets = [0, 14], sizes = [8, 1], strides = [1, 1]} : vector<8x16xi32> to vector<8x1xi32>
    %158 = vector.broadcast %157 : vector<8x1xi32> to vector<8x128xi32>
    %159 = arith.cmpi eq, %158, %1 : vector<8x128xi32>
    %cst_72 = arith.constant 1.000000e+00 : f32
    %cst_73 = arith.constant 0.000000e+00 : f32
    %160 = vector.broadcast %cst_72 : f32 to vector<8x128xf32>
    %161 = vector.broadcast %cst_73 : f32 to vector<8x128xf32>
    %162 = arith.select %159, %160, %161 : vector<8x128xi1>, vector<8x128xf32>
    %163 = arith.truncf %162 : vector<8x128xf32> to vector<8x128xbf16>
    %c14 = arith.constant 14 : index
    %c0_74 = arith.constant 0 : index
    %c0_75 = arith.constant 0 : index
    %164 = vector.load %arg2[%c14, %c0_74, %c0_75] : memref<16x128x128xbf16, #tpu.memory_space<vmem>>, vector<1x128x128xbf16>
    %165 = vector.shape_cast %164 : vector<1x128x128xbf16> to vector<128x128xbf16>
    %cst_76 = arith.constant dense<0.000000e+00> : vector<8x128xf32>
    %166 = tpu.matmul %163, %165, %cst_76 {dimension_numbers = #tpu.dot_dimension_numbers<[1], [0], [0], [1], [0, 0, 1, 1], [], []>} : vector<8x128xbf16>, vector<128x128xbf16>, vector<8x128xf32> -> vector<8x128xf32>
    %167 = arith.addf %156, %166 : vector<8x128xf32>
    %168 = vector.extract_strided_slice %0 {offsets = [0, 15], sizes = [8, 1], strides = [1, 1]} : vector<8x16xi32> to vector<8x1xi32>
    %169 = vector.broadcast %168 : vector<8x1xi32> to vector<8x128xi32>
    %170 = arith.cmpi eq, %169, %1 : vector<8x128xi32>
    %cst_77 = arith.constant 1.000000e+00 : f32
    %cst_78 = arith.constant 0.000000e+00 : f32
    %171 = vector.broadcast %cst_77 : f32 to vector<8x128xf32>
    %172 = vector.broadcast %cst_78 : f32 to vector<8x128xf32>
    %173 = arith.select %170, %171, %172 : vector<8x128xi1>, vector<8x128xf32>
    %174 = arith.truncf %173 : vector<8x128xf32> to vector<8x128xbf16>
    %c15 = arith.constant 15 : index
    %c0_79 = arith.constant 0 : index
    %c0_80 = arith.constant 0 : index
    %175 = vector.load %arg2[%c15, %c0_79, %c0_80] : memref<16x128x128xbf16, #tpu.memory_space<vmem>>, vector<1x128x128xbf16>
    %176 = vector.shape_cast %175 : vector<1x128x128xbf16> to vector<128x128xbf16>
    %cst_81 = arith.constant dense<0.000000e+00> : vector<8x128xf32>
    %177 = tpu.matmul %174, %176, %cst_81 {dimension_numbers = #tpu.dot_dimension_numbers<[1], [0], [0], [1], [0, 0, 1, 1], [], []>} : vector<8x128xbf16>, vector<128x128xbf16>, vector<8x128xf32> -> vector<8x128xf32>
    %178 = arith.addf %167, %177 : vector<8x128xf32>
    %c0_82 = arith.constant 0 : index
    %c0_83 = arith.constant 0 : index
    %179 = vector.load %arg3[%c0_82, %c0_83] : memref<1x128xf32, #tpu.memory_space<vmem>>, vector<1x128xf32>
    %180 = vector.broadcast %179 : vector<1x128xf32> to vector<8x128xf32>
    %181 = arith.addf %178, %180 : vector<8x128xf32>
    %cst_84 = arith.constant 0.000000e+00 : f32
    %182 = vector.broadcast %cst_84 : f32 to vector<8x128xf32>
    %183 = arith.maximumf %181, %182 : vector<8x128xf32>
    %184 = arith.truncf %183 : vector<8x128xf32> to vector<8x128xbf16>
    %c0_85 = arith.constant 0 : index
    %c0_86 = arith.constant 0 : index
    %185 = vector.load %arg4[%c0_85, %c0_86] : memref<128x128xbf16, #tpu.memory_space<vmem>>, vector<128x128xbf16>
    %cst_87 = arith.constant dense<0.000000e+00> : vector<8x128xf32>
    %186 = tpu.matmul %184, %185, %cst_87 {dimension_numbers = #tpu.dot_dimension_numbers<[1], [0], [0], [1], [0, 0, 1, 1], [], []>} : vector<8x128xbf16>, vector<128x128xbf16>, vector<8x128xf32> -> vector<8x128xf32>
    %c0_88 = arith.constant 0 : index
    %c0_89 = arith.constant 0 : index
    %187 = vector.load %arg5[%c0_88, %c0_89] : memref<1x128xf32, #tpu.memory_space<vmem>>, vector<1x128xf32>
    %188 = vector.broadcast %187 : vector<1x128xf32> to vector<8x128xf32>
    %189 = arith.addf %186, %188 : vector<8x128xf32>
    %c0_90 = arith.constant 0 : index
    %c0_91 = arith.constant 0 : index
    %190 = vector.load %arg6[%c0_90, %c0_91] : memref<8x128xf32, #tpu.memory_space<vmem>>, vector<8x128xf32>
    tpu.vector_store %arg6[%c0_90, %c0_91], %189 {strides = array<i32>} : memref<8x128xf32, #tpu.memory_space<vmem>>, vector<8x128xf32>,
    return
  }
  func.func @transform_0(%arg0: i32) -> (i32, i32) {
    %c0_i32 = arith.constant 0 : i32
    %c0_i32_0 = arith.constant 0 : i32
    return %arg0, %c0_i32 : i32, i32
  }
  func.func @transform_1(%arg0: i32) -> (i32, i32, i32) {
    %c0_i32 = arith.constant 0 : i32
    %c0_i32_0 = arith.constant 0 : i32
    %c0_i32_1 = arith.constant 0 : i32
    %c0_i32_2 = arith.constant 0 : i32
    return %c0_i32, %c0_i32_0, %c0_i32_1 : i32, i32, i32
  }
  func.func @transform_2(%arg0: i32) -> (i32, i32) {
    %c0_i32 = arith.constant 0 : i32
    %c0_i32_0 = arith.constant 0 : i32
    %c0_i32_1 = arith.constant 0 : i32
    return %c0_i32, %c0_i32_0 : i32, i32
  }
  func.func @transform_3(%arg0: i32) -> (i32, i32) {
    %c0_i32 = arith.constant 0 : i32
    %c0_i32_0 = arith.constant 0 : i32
    %c0_i32_1 = arith.constant 0 : i32
    return %c0_i32, %c0_i32_0 : i32, i32
  }
  func.func @transform_4(%arg0: i32) -> (i32, i32) {
    %c0_i32 = arith.constant 0 : i32
    %c0_i32_0 = arith.constant 0 : i32
    %c0_i32_1 = arith.constant 0 : i32
    return %c0_i32, %c0_i32_0 : i32, i32
  }
  func.func @transform_5(%arg0: i32) -> (i32, i32) {
    %c0_i32 = arith.constant 0 : i32
    %c0_i32_0 = arith.constant 0 : i32
    return %arg0, %c0_i32 : i32, i32
  }
}

</mosaic_0001>

<llo_original>
// kernel: textcnn_forward.1
$region0: #{textcnn_forward.1}
  #allocation0 [shape = 'u32[]', space=smem, size = 0x4, offset = 0x4, fixed_abs, tag = 'smem constant byte address 0x4 - core index']
  #allocation1 [shape = 'u32[144,128]{1,0:T(1,128)}', space=vmem, size = 0x12000, scoped, tag = 'internal scratch']
  %s0 = inlined_call_operand.hbm [shape: s32[16,16], index: 0, kind: input, shape index: {}]
  %s1 = inlined_call_operand.hbm [shape: bf16[16,128,128], index: 1, kind: input, shape index: {}]
  %s2 = inlined_call_operand.vmem [shape: f32[1,128], index: 2, kind: input, shape index: {}]
  %s3 = inlined_call_operand.hbm [shape: bf16[128,128], index: 3, kind: input, shape index: {}]
  %s4 = inlined_call_operand.vmem [shape: f32[1,128], index: 4, kind: input, shape index: {}]
  %s5 = inlined_call_operand.vmem [shape: f32[16,128], index: 5, kind: output, shape index: {}]
  %s6 = sld [smem:[#allocation0]]
  $region65: #{textcnn_forward.1} parent=0
    _
  %s8 = ssub.s32 1, %s6
  %s9 = scalar_select 0, %s8, %s6
  $region1: #{textcnn_forward.1} parent=0
    #allocation2 [shape = 'u8[8192]{0}', space=vmem, size = 0x2000, scoped, tag = 'input window, operand 0']
    #allocation3 [shape = 's32[2]{0}', space=sflag, size = 0x8, scoped, tag = 'scoped memory for textcnn_forward.1']
    #allocation4 [shape = 'u8[524288]{0}', space=vmem, size = 0x80000, scoped, tag = 'input window, operand 1, single buffered']
    #allocation5 [shape = 's32[1]{0}', space=sflag, size = 0x4, scoped, tag = 'scoped memory for textcnn_forward.1']
    #allocation6 [shape = 'u8[32768]{0}', space=vmem, size = 0x8000, scoped, tag = 'input window, operand 3, single buffered']
    %10 = vsyncpa [#allocation3], 0
    %s11 = scalar_lea.sflag [#allocation3], 1
    %12 = vsyncpa %s11, 0
    %13 = vsyncpa [#allocation5], 0
    loop: start=0, step=1, limit=4
    $region2: #{textcnn_forward.1} parent=1 // loop_pre_header
      _
    $region3: #{textcnn_forward.1} parent=1 // loop_header
      %s15 = sphi 0, %s19
      %p16 = scmp.ge.s32.totalorder %s15, 4
      %s25 = sphi 0, %s27
      %s28 = sphi 0, %s25
      %s29 = sphi 0, %s28
      %s45 = sphi 0, %s29
      %s49 = sphi 0, %s49
      %s51 = sphi 0, %s49
      %s52 = sphi 0, %s51
      %s66 = sphi 0, %s52
      %s70 = sphi 0, %s70
      %s72 = sphi 0, %s70
      %s73 = sphi 0, %s72
      %s87 = sphi 0, %s73
      %s91 = sphi 0, %s91
      %s93 = sphi 0, %s91
      %s94 = sphi 0, %s93
      %s108 = sphi 0, %s94
      %s112 = sphi 0, %s112
      %s114 = sphi 0, %s112
      %s115 = sphi 0, %s114
      %s129 = sphi 0, %s115
      %s135 = sphi 0, %s137
      %s138 = sphi 0, %s135
      %s139 = sphi 0, %s138
      %s155 = sphi 0, %s139
    $region4: #{textcnn_forward.1} parent=1 // loop_header_branch
      %18 = sbr.rel (%p16) target = $region8
    $region5: #{textcnn_forward.1} parent=1 // loop_body
      %s20 = ssub.s32 %s15, 1
      %s21 = ssub.s32 %s15, 2
      %s22 = sadd.s32 %s15, 1
      %s23 = ssub.s32 %s15, %s22
      %p24 = scmp.eq.s32.totalorder %s23, 0
      %s26 = sadd.s32 %s25, 1
      %s27 = scalar_select %p24, %s25, %s26
      %p30 = pneg %p24
      %p31 = scmp.eq.s32.totalorder %s15, 1
      %p32 = por %p30, %p31
      %p33 = scmp.ne.s32.totalorder %s25, %s28
      %p34 = scmp.eq.s32.totalorder %s15, 0
      %p35 = por %p33, %p34
      %p36 = scmp.ne.s32.totalorder %s25, %s28
      %p37 = scmp.eq.s32.totalorder %s20, 1
      %p38 = por %p36, %p37
      %p39 = scmp.ne.s32.totalorder %s28, %s29
      %p40 = scmp.eq.s32.totalorder %s20, 0
      %p41 = por %p39, %p40
      %p42 = scmp.ne.s32.totalorder %s28, %s29
      %p43 = scmp.eq.s32.totalorder %s21, 1
      %p44 = por %p42, %p43
      %p46 = scmp.ne.s32.totalorder %s29, %s45
      %p47 = scmp.eq.s32.totalorder %s21, 0
      %p48 = por %p46, %p47
      %s50 = sadd.s32 %s49, 1
      %p53 = scmp.eq.s32.totalorder %s15, 1
      %p54 = scmp.ne.s32.totalorder %s49, %s51
      %p55 = scmp.eq.s32.totalorder %s15, 0
      %p56 = por %p54, %p55
      %p57 = scmp.ne.s32.totalorder %s49, %s51
      %p58 = scmp.eq.s32.totalorder %s20, 1
      %p59 = por %p57, %p58
      %p60 = scmp.ne.s32.totalorder %s51, %s52
      %p61 = scmp.eq.s32.totalorder %s20, 0
      %p62 = por %p60, %p61
      %p63 = scmp.ne.s32.totalorder %s51, %s52
      %p64 = scmp.eq.s32.totalorder %s21, 1
      %p65 = por %p63, %p64
      %p67 = scmp.ne.s32.totalorder %s52, %s66
      %p68 = scmp.eq.s32.totalorder %s21, 0
      %p69 = por %p67, %p68
      %s71 = sadd.s32 %s70, 1
      %p74 = scmp.eq.s32.totalorder %s15, 1
      %p75 = scmp.ne.s32.totalorder %s70, %s72
      %p76 = scmp.eq.s32.totalorder %s15, 0
      %p77 = por %p75, %p76
      %p78 = scmp.ne.s32.totalorder %s70, %s72
      %p79 = scmp.eq.s32.totalorder %s20, 1
      %p80 = por %p78, %p79
      %p81 = scmp.ne.s32.totalorder %s72, %s73
      %p82 = scmp.eq.s32.totalorder %s20, 0
      %p83 = por %p81, %p82
      %p84 = scmp.ne.s32.totalorder %s72, %s73
      %p85 = scmp.eq.s32.totalorder %s21, 1
      %p86 = por %p84, %p85
      %p88 = scmp.ne.s32.totalorder %s73, %s87
      %p89 = scmp.eq.s32.totalorder %s21, 0
      %p90 = por %p88, %p89
      %s92 = sadd.s32 %s91, 1
      %p95 = scmp.eq.s32.totalorder %s15, 1
      %p96 = scmp.ne.s32.totalorder %s91, %s93
      %p97 = scmp.eq.s32.totalorder %s15, 0
      %p98 = por %p96, %p97
      %p99 = scmp.ne.s32.totalorder %s91, %s93
      %p100 = scmp.eq.s32.totalorder %s20, 1
      %p101 = por %p99, %p100
      %p102 = scmp.ne.s32.totalorder %s93, %s94
      %p103 = scmp.eq.s32.totalorder %s20, 0
      %p104 = por %p102, %p103
      %p105 = scmp.ne.s32.totalorder %s93, %s94
      %p106 = scmp.eq.s32.totalorder %s21, 1
      %p107 = por %p105, %p106
      %p109 = scmp.ne.s32.totalorder %s94, %s108
      %p110 = scmp.eq.s32.totalorder %s21, 0
      %p111 = por %p109, %p110
      %s113 = sadd.s32 %s112, 1
      %p116 = scmp.eq.s32.totalorder %s15, 1
      %p117 = scmp.ne.s32.totalorder %s112, %s114
      %p118 = scmp.eq.s32.totalorder %s15, 0
      %p119 = por %p117, %p118
      %p120 = scmp.ne.s32.totalorder %s112, %s114
      %p121 = scmp.eq.s32.totalorder %s20, 1
      %p122 = por %p120, %p121
      %p123 = scmp.ne.s32.totalorder %s114, %s115
      %p124 = scmp.eq.s32.totalorder %s20, 0
      %p125 = por %p123, %p124
      %p126 = scmp.ne.s32.totalorder %s114, %s115
      %p127 = scmp.eq.s32.totalorder %s21, 1
      %p128 = por %p126, %p127
      %p130 = scmp.ne.s32.totalorder %s115, %s129
      %p131 = scmp.eq.s32.totalorder %s21, 0
      %p132 = por %p130, %p131
      %s133 = ssub.s32 %s15, %s22
      %p134 = scmp.eq.s32.totalorder %s133, 0
      %s136 = sadd.s32 %s135, 1
      %s137 = scalar_select %p134, %s135, %s136
      %p140 = pneg %p134
      %p141 = scmp.eq.s32.totalorder %s15, 1
      %p142 = por %p140, %p141
      %p143 = scmp.ne.s32.totalorder %s135, %s138
      %p144 = scmp.eq.s32.totalorder %s15, 0
      %p145 = por %p143, %p144
      %p146 = scmp.ne.s32.totalorder %s135, %s138
      %p147 = scmp.eq.s32.totalorder %s20, 1
      %p148 = por %p146, %p147
      %p149 = scmp.ne.s32.totalorder %s138, %s139
      %p150 = scmp.eq.s32.totalorder %s20, 0
      %p151 = por %p149, %p150
      %p152 = scmp.ne.s32.totalorder %s138, %s139
      %p153 = scmp.eq.s32.totalorder %s21, 1
      %p154 = por %p152, %p153
      %p156 = scmp.ne.s32.totalorder %s139, %s155
      %p157 = scmp.eq.s32.totalorder %s21, 0
      %p158 = por %p156, %p157
      %p159 = scmp.le.s32.totalorder 1, %s15
      %p160 = scmp.lt.s32.totalorder %s15, 3
      %p161 = pnand %p159, %p160
      %p162 = pneg %p161
      // Predicated region
      $region9: #{textcnn_forward.1} parent=5 // pred_check
        _
      $region10: #{textcnn_forward.1} parent=5 // pred_check_branch
        %164 = sbr.rel (%p161) target = $region12
      $region11: #{textcnn_forward.1} parent=5 // pred_region
        %s165 = ssub.s32 %s15, 1
        // Predicated region
        $region13: #{textcnn_forward.1} parent=11 // pred_check
          %p166 = pneg %p62
        $region14: #{textcnn_forward.1} parent=11 // pred_check_branch
          %168 = sbr.rel (%p166) target = $region16
        $region15: #{textcnn_forward.1} parent=11 // pred_region
          %s170 = ssub.s32 16384, 16384
          %171 = vsyncadd [#allocation5], %s170
          %s172 = sshll.u32 [#allocation4], 4
          %s173 = int_to_ptr.vmem [resolvable:$true] %s172
          %178 = dma.hbm_to_vmem [thread:$0]  %s1, 16384, %s173, [#allocation5], 64, 64, 4
        $region16: #{textcnn_forward.1} parent=11 // pred_fallthru
          _
        // Predicated region
        $region17: #{textcnn_forward.1} parent=11 // pred_check
          %p179 = pneg %p83
        $region18: #{textcnn_forward.1} parent=11 // pred_check_branch
          %181 = sbr.rel (%p179) target = $region20
        $region19: #{textcnn_forward.1} parent=11 // pred_region
          _
        $region20: #{textcnn_forward.1} parent=11 // pred_fallthru
          _
        // Predicated region
        $region21: #{textcnn_forward.1} parent=11 // pred_check
          %p182 = pneg %p104
        $region22: #{textcnn_forward.1} parent=11 // pred_check_branch
          %184 = sbr.rel (%p182) target = $region24
        $region23: #{textcnn_forward.1} parent=11 // pred_region
          %s186 = ssub.s32 1024, 1024
          %187 = vsyncadd [#allocation5], %s186
          %s188 = sshll.u32 [#allocation6], 4
          %s189 = int_to_ptr.vmem [resolvable:$true] %s188
          %194 = dma.hbm_to_vmem [thread:$0]  %s3, 1024, %s189, [#allocation5], 64, 64, 4
        $region24: #{textcnn_forward.1} parent=11 // pred_fallthru
          _
        // Predicated region
        $region25: #{textcnn_forward.1} parent=11 // pred_check
          %p195 = pneg %p125
        $region26: #{textcnn_forward.1} parent=11 // pred_check_branch
          %197 = sbr.rel (%p195) target = $region28
        $region27: #{textcnn_forward.1} parent=11 // pred_region
          _
        $region28: #{textcnn_forward.1} parent=11 // pred_fallthru
          _
      $region12: #{textcnn_forward.1} parent=5 // pred_fallthru
        _
      %p198 = scmp.lt.s32.totalorder %s15, 2
      // Predicated region
      $region29: #{textcnn_forward.1} parent=5 // pred_check
        %p199 = pneg %p198
      $region30: #{textcnn_forward.1} parent=5 // pred_check_branch
        %201 = sbr.rel (%p199) target = $region32
      $region31: #{textcnn_forward.1} parent=5 // pred_region
        // Predicated region
        $region33: #{textcnn_forward.1} parent=31 // pred_check
          %p202 = pneg %p35
        $region34: #{textcnn_forward.1} parent=31 // pred_check_branch
          %204 = sbr.rel (%p202) target = $region36
        $region35: #{textcnn_forward.1} parent=31 // pred_region
          %s205 = sand.u32 %s25, 1
          %s206 = scalar_lea.sflag [#allocation3], %s205
          %s207 = sand.u32 %s25, 1
          %s208 = smul.addr %s207, 8
          %s209 = scalar_lea.vmem [#allocation2], %s208
          %s211 = ssub.s32 128, 128
          %212 = vsyncadd %s206, %s211
          %s213 = smul.addr %s15, 128
          %s214 = scalar_lea.hbm %s0, %s213
          %s216 = sshll.u32 %s209, 4
          %s217 = int_to_ptr.vmem [resolvable:$true] %s216
          %219 = dma.hbm_to_vmem [thread:$0]  %s214, 128, %s217, %s206
        $region36: #{textcnn_forward.1} parent=31 // pred_fallthru
          _
      $region32: #{textcnn_forward.1} parent=5 // pred_fallthru
        _
      %p220 = scmp.le.s32.totalorder 1, %s15
      %p221 = scmp.lt.s32.totalorder %s15, 3
      %p222 = pnand %p220, %p221
      %p223 = pneg %p222
      // Predicated region
      $region37: #{textcnn_forward.1} parent=5 // pred_check
        _
      $region38: #{textcnn_forward.1} parent=5 // pred_check_branch
        %225 = sbr.rel (%p222) target = $region40
      $region39: #{textcnn_forward.1} parent=5 // pred_region
        %s226 = ssub.s32 %s15, 1
        %s227 = sand.u32 %s28, 1
        %s228 = scalar_lea.sflag [#allocation3], %s227
        %s229 = sand.u32 %s28, 1
        %s230 = smul.addr %s229, 8
        %s231 = scalar_lea.vmem [#allocation2], %s230
        // Predicated region
        $region41: #{textcnn_forward.1} parent=39 // pred_check
          %p232 = pneg %p41
        $region42: #{textcnn_forward.1} parent=39 // pred_check_branch
          %234 = sbr.rel (%p232) target = $region44
        $region43: #{textcnn_forward.1} parent=39 // pred_region
          %235 = dma.done %s228, 128
        $region44: #{textcnn_forward.1} parent=39 // pred_fallthru
          _
        // Predicated region
        $region45: #{textcnn_forward.1} parent=39 // pred_check
          %p236 = pneg %p62
        $region46: #{textcnn_forward.1} parent=39 // pred_check_branch
          %238 = sbr.rel (%p236) target = $region48
        $region47: #{textcnn_forward.1} parent=39 // pred_region
          %239 = dma.done [#allocation5], 16384
        $region48: #{textcnn_forward.1} parent=39 // pred_fallthru
          _
        // Predicated region
        $region49: #{textcnn_forward.1} parent=39 // pred_check
          %p240 = pneg %p104
        $region50: #{textcnn_forward.1} parent=39 // pred_check_branch
          %242 = sbr.rel (%p240) target = $region52
        $region51: #{textcnn_forward.1} parent=39 // pred_region
          %243 = dma.done [#allocation5], 1024
        $region52: #{textcnn_forward.1} parent=39 // pred_fallthru
          _
        %s244 = sand.u32 %s28, 1
        %s245 = scalar_lea.sflag [#allocation3], %s244
        %s246 = sand.u32 %s28, 1
        %s247 = smul.addr %s246, 8
        %s248 = scalar_lea.vmem [#allocation2], %s247
        %p249 = pneg %p41
        %p250 = pneg %p38
        %p251 = pneg %p62
        %p252 = pneg %p59
        %p253 = pneg %p83
        %p254 = pneg %p80
        %p255 = pneg %p104
        %p256 = pneg %p101
        %p257 = pneg %p125
        %p258 = pneg %p122
        %p259 = pneg %p151
        %p260 = pneg %p148
        %p261 = scmp.lt.s32.totalorder %s20, 1
        %s262 = scalar_select %p261, %s20, 1
        %s263 = smul.addr %s262, 8
        %s264 = scalar_lea.vmem %s5, %s263
        %p265 = scmp.lt.s32.totalorder %s20, 1
        %s266 = scalar_select %p265, %s20, 1
        %s267 = smul.addr %s266, 8
        %s268 = scalar_lea.vmem %s5, %s267
        %v270 = vld [vmem:[%s231] sm:$0xff]
        %v271 = vlaneseq
        %v272 = vand.u32 %v271, 127
        %273 = vset.pattern.permute.xlu0 0
        %274 = vperm.xlu0 %273, %v270
        %v275 = vpop.permute.xlu0 %274
        %vm276 = vcmp.eq.s32.totalorder %v275, %v272
        %v277 = vsel %vm276, 1.0, 0.0
        %v278 = vpack.c.bf16 %v277, %v277
        %v279 = vld [vmem:[#allocation4] sm:$0xf]
        %v280 = vld [vmem:[#allocation4 + $0x4] sm:$0xf]
        %v281 = vld [vmem:[#allocation4 + $0x8] sm:$0xf]
        %v282 = vld [vmem:[#allocation4 + $0xc] sm:$0xf]
        %v283 = vld [vmem:[#allocation4 + $0x10] sm:$0xf]
        %v284 = vld [vmem:[#allocation4 + $0x14] sm:$0xf]
        %v285 = vld [vmem:[#allocation4 + $0x18] sm:$0xf]
        %v286 = vld [vmem:[#allocation4 + $0x1c] sm:$0xf]
        %v287 = vld [vmem:[#allocation4 + $0x20] sm:$0xf]
        %v288 = vld [vmem:[#allocation4 + $0x24] sm:$0xf]
        %v289 = vld [vmem:[#allocation4 + $0x28] sm:$0xf]
        %v290 = vld [vmem:[#allocation4 + $0x2c] sm:$0xf]
        %v291 = vld [vmem:[#allocation4 + $0x30] sm:$0xf]
        %v292 = vld [vmem:[#allocation4 + $0x34] sm:$0xf]
        %v293 = vld [vmem:[#allocation4 + $0x38] sm:$0xf]
        %v294 = vld [vmem:[#allocation4 + $0x3c] sm:$0xf]
        %295 = vset.pattern.permute.xlu0 1
        %296 = vperm.xlu0 %295, %v270
        %v297 = vpop.permute.xlu0 %296
        %vm298 = vcmp.eq.s32.totalorder %v297, %v272
        %v299 = vsel %vm298, 1.0, 0.0
        %v300 = vpack.c.bf16 %v299, %v299
        %s301 = scalar_lea.vmem [#allocation4], 64
        %v302 = vld [vmem:[%s301] sm:$0xf]
        %v303 = vld [vmem:[%s301 + $0x4] sm:$0xf]
        %v304 = vld [vmem:[%s301 + $0x8] sm:$0xf]
        %v305 = vld [vmem:[%s301 + $0xc] sm:$0xf]
        %v306 = vld [vmem:[%s301 + $0x10] sm:$0xf]
        %v307 = vld [vmem:[%s301 + $0x14] sm:$0xf]
        %v308 = vld [vmem:[%s301 + $0x18] sm:$0xf]
        %v309 = vld [vmem:[%s301 + $0x1c] sm:$0xf]
        %v310 = vld [vmem:[%s301 + $0x20] sm:$0xf]
        %v311 = vld [vmem:[%s301 + $0x24] sm:$0xf]
        %v312 = vld [vmem:[%s301 + $0x28] sm:$0xf]
        %v313 = vld [vmem:[%s301 + $0x2c] sm:$0xf]
        %v314 = vld [vmem:[%s301 + $0x30] sm:$0xf]
        %v315 = vld [vmem:[%s301 + $0x34] sm:$0xf]
        %v316 = vld [vmem:[%s301 + $0x38] sm:$0xf]
        %v317 = vld [vmem:[%s301 + $0x3c] sm:$0xf]
        %v334 = vunpack.c.l.b16 %v302
        %v335 = vunpack.c.l.b16 %v303
        %v336 = vunpack.c.l.b16 %v304
        %v337 = vunpack.c.l.b16 %v305
        %v338 = vunpack.c.l.b16 %v306
        %v339 = vunpack.c.l.b16 %v307
        %v340 = vunpack.c.l.b16 %v308
        %v341 = vunpack.c.l.b16 %v309
        %v342 = vunpack.c.l.b16 %v310
        %v343 = vunpack.c.l.b16 %v311
        %v344 = vunpack.c.l.b16 %v312
        %v345 = vunpack.c.l.b16 %v313
        %v346 = vunpack.c.l.b16 %v314
        %v347 = vunpack.c.l.b16 %v315
        %v348 = vunpack.c.l.b16 %v316
        %v349 = vunpack.c.l.b16 %v317
        %v350 = vpack.c.b16 %v335, %v334
        %v351 = vpack.c.b16 %v337, %v336
        %v352 = vpack.c.b16 %v339, %v338
        %v353 = vpack.c.b16 %v341, %v340
        %v354 = vpack.c.b16 %v343, %v342
        %v355 = vpack.c.b16 %v345, %v344
        %v356 = vpack.c.b16 %v347, %v346
        %v357 = vpack.c.b16 %v349, %v348
        %366 = vmatprep.subr.bf16.mxu0 0
        %367 = vmatpush1.bf16.msra.mxu0 %v350
        %368 = vmatprep.subr.bf16.mxu0 0
        %369 = vmatpush1.bf16.msra.mxu0 %v351
        %370 = vmatprep.subr.bf16.mxu0 0
        %371 = vmatpush1.bf16.msra.mxu0 %v352
        %372 = vmatprep.subr.bf16.mxu0 0
        %373 = vmatpush1.bf16.msra.mxu0 %v353
        %374 = vmatprep.subr.bf16.mxu0 0
        %375 = vmatpush1.bf16.msra.mxu0 %v354
        %376 = vmatprep.subr.bf16.mxu0 0
        %377 = vmatpush1.bf16.msra.mxu0 %v355
        %378 = vmatprep.subr.bf16.mxu0 0
        %379 = vmatpush1.bf16.msra.mxu0 %v356
        %380 = vmatprep.subr.bf16.mxu0 0
        %381 = vmatpush1.bf16.msra.mxu0 %v357
        %382 = vmatprep.subr.bf16.mxu0 0
        %383 = vmatpush1.bf16.msra.mxu0 0
        %384 = vmatprep.subr.bf16.mxu0 0
        %385 = vmatpush1.bf16.msra.mxu0 0
        %386 = vmatprep.subr.bf16.mxu0 0
        %387 = vmatpush1.bf16.msra.mxu0 0
        %388 = vmatprep.subr.bf16.mxu0 0
        %389 = vmatpush1.bf16.msra.mxu0 0
        %390 = vmatprep.subr.bf16.mxu0 0
        %391 = vmatpush1.bf16.msra.mxu0 0
        %392 = vmatprep.subr.bf16.mxu0 0
        %393 = vmatpush1.bf16.msra.mxu0 0
        %394 = vmatprep.subr.bf16.mxu0 0
        %395 = vmatpush1.bf16.msra.mxu0 0
        %396 = vmatprep.subr.bf16.mxu0 0
        %397 = vmatpush1.bf16.msra.mxu0 0
        %398 = vmatprep.mubr.bf16.mxu0 0
        %399 = vmatmul.mubr.bf16.gmra.mrb[0].mxu0 %v300
        %v400 = vpop.f32.mrb[0].mxu0
        %v401 = vadd.f32 0.0, %v400
        %v402 = vpop.f32.mrb[0].mxu0
        %v403 = vpop.f32.mrb[0].mxu0
        %v404 = vpop.f32.mrb[0].mxu0
        %405 = vdwg.mxu0
        %v422 = vunpack.c.l.b16 %v279
        %v423 = vunpack.c.l.b16 %v280
        %v424 = vunpack.c.l.b16 %v281
        %v425 = vunpack.c.l.b16 %v282
        %v426 = vunpack.c.l.b16 %v283
        %v427 = vunpack.c.l.b16 %v284
        %v428 = vunpack.c.l.b16 %v285
        %v429 = vunpack.c.l.b16 %v286
        %v430 = vunpack.c.l.b16 %v287
        %v431 = vunpack.c.l.b16 %v288
        %v432 = vunpack.c.l.b16 %v289
        %v433 = vunpack.c.l.b16 %v290
        %v434 = vunpack.c.l.b16 %v291
        %v435 = vunpack.c.l.b16 %v292
        %v436 = vunpack.c.l.b16 %v293
        %v437 = vunpack.c.l.b16 %v294
        %v438 = vpack.c.b16 %v423, %v422
        %v439 = vpack.c.b16 %v425, %v424
        %v440 = vpack.c.b16 %v427, %v426
        %v441 = vpack.c.b16 %v429, %v428
        %v442 = vpack.c.b16 %v431, %v430
        %v443 = vpack.c.b16 %v433, %v432
        %v444 = vpack.c.b16 %v435, %v434
        %v445 = vpack.c.b16 %v437, %v436
        %454 = vmatprep.subr.bf16.mxu0 0
        %455 = vmatpush1.bf16.msra.mxu0 %v438
        %456 = vmatprep.subr.bf16.mxu0 0
        %457 = vmatpush1.bf16.msra.mxu0 %v439
        %458 = vmatprep.subr.bf16.mxu0 0
        %459 = vmatpush1.bf16.msra.mxu0 %v440
        %460 = vmatprep.subr.bf16.mxu0 0
        %461 = vmatpush1.bf16.msra.mxu0 %v441
        %462 = vmatprep.subr.bf16.mxu0 0
        %463 = vmatpush1.bf16.msra.mxu0 %v442
        %464 = vmatprep.subr.bf16.mxu0 0
        %465 = vmatpush1.bf16.msra.mxu0 %v443
        %466 = vmatprep.subr.bf16.mxu0 0
        %467 = vmatpush1.bf16.msra.mxu0 %v444
        %468 = vmatprep.subr.bf16.mxu0 0
        %469 = vmatpush1.bf16.msra.mxu0 %v445
        %470 = vmatprep.subr.bf16.mxu0 0
        %471 = vmatpush1.bf16.msra.mxu0 0
        %472 = vmatprep.subr.bf16.mxu0 0
        %473 = vmatpush1.bf16.msra.mxu0 0
        %474 = vmatprep.subr.bf16.mxu0 0
        %475 = vmatpush1.bf16.msra.mxu0 0
        %476 = vmatprep.subr.bf16.mxu0 0
        %477 = vmatpush1.bf16.msra.mxu0 0
        %478 = vmatprep.subr.bf16.mxu0 0
        %479 = vmatpush1.bf16.msra.mxu0 0
        %480 = vmatprep.subr.bf16.mxu0 0
        %481 = vmatpush1.bf16.msra.mxu0 0
        %482 = vmatprep.subr.bf16.mxu0 0
        %483 = vmatpush1.bf16.msra.mxu0 0
        %484 = vmatprep.subr.bf16.mxu0 0
        %485 = vmatpush1.bf16.msra.mxu0 0
        %486 = vmatprep.mubr.bf16.mxu0 0
        %487 = vmatmul.mubr.bf16.gmra.mrb[0].mxu0 %v278
        %v488 = vpop.f32.mrb[0].mxu0
        %v489 = vadd.f32 %v401, %v488
        %v490 = vpop.f32.mrb[0].mxu0
        %v491 = vpop.f32.mrb[0].mxu0
        %v492 = vpop.f32.mrb[0].mxu0
        %493 = vdwg.mxu0
        %494 = vset.pattern.permute.xlu0 2
        %495 = vperm.xlu0 %494, %v270
        %v496 = vpop.permute.xlu0 %495
        %vm497 = vcmp.eq.s32.totalorder %v496, %v272
        %v498 = vsel %vm497, 1.0, 0.0
        %v499 = vpack.c.bf16 %v498, %v498
        %s500 = scalar_lea.vmem [#allocation4], 128
        %v501 = vld [vmem:[%s500] sm:$0xf]
        %v502 = vld [vmem:[%s500 + $0x4] sm:$0xf]
        %v503 = vld [vmem:[%s500 + $0x8] sm:$0xf]
        %v504 = vld [vmem:[%s500 + $0xc] sm:$0xf]
        %v505 = vld [vmem:[%s500 + $0x10] sm:$0xf]
        %v506 = vld [vmem:[%s500 + $0x14] sm:$0xf]
        %v507 = vld [vmem:[%s500 + $0x18] sm:$0xf]
        %v508 = vld [vmem:[%s500 + $0x1c] sm:$0xf]
        %v509 = vld [vmem:[%s500 + $0x20] sm:$0xf]
        %v510 = vld [vmem:[%s500 + $0x24] sm:$0xf]
        %v511 = vld [vmem:[%s500 + $0x28] sm:$0xf]
        %v512 = vld [vmem:[%s500 + $0x2c] sm:$0xf]
        %v513 = vld [vmem:[%s500 + $0x30] sm:$0xf]
        %v514 = vld [vmem:[%s500 + $0x34] sm:$0xf]
        %v515 = vld [vmem:[%s500 + $0x38] sm:$0xf]
        %v516 = vld [vmem:[%s500 + $0x3c] sm:$0xf]
        %v533 = vunpack.c.l.b16 %v501
        %v534 = vunpack.c.l.b16 %v502
        %v535 = vunpack.c.l.b16 %v503
        %v536 = vunpack.c.l.b16 %v504
        %v537 = vunpack.c.l.b16 %v505
        %v538 = vunpack.c.l.b16 %v506
        %v539 = vunpack.c.l.b16 %v507
        %v540 = vunpack.c.l.b16 %v508
        %v541 = vunpack.c.l.b16 %v509
        %v542 = vunpack.c.l.b16 %v510
        %v543 = vunpack.c.l.b16 %v511
        %v544 = vunpack.c.l.b16 %v512
        %v545 = vunpack.c.l.b16 %v513
        %v546 = vunpack.c.l.b16 %v514
        %v547 = vunpack.c.l.b16 %v515
        %v548 = vunpack.c.l.b16 %v516
        %v549 = vpack.c.b16 %v534, %v533
        %v550 = vpack.c.b16 %v536, %v535
        %v551 = vpack.c.b16 %v538, %v537
        %v552 = vpack.c.b16 %v540, %v539
        %v553 = vpack.c.b16 %v542, %v541
        %v554 = vpack.c.b16 %v544, %v543
        %v555 = vpack.c.b16 %v546, %v545
        %v556 = vpack.c.b16 %v548, %v547
        %565 = vmatprep.subr.bf16.mxu0 0
        %566 = vmatpush1.bf16.msra.mxu0 %v549
        %567 = vmatprep.subr.bf16.mxu0 0
        %568 = vmatpush1.bf16.msra.mxu0 %v550
        %569 = vmatprep.subr.bf16.mxu0 0
        %570 = vmatpush1.bf16.msra.mxu0 %v551
        %571 = vmatprep.subr.bf16.mxu0 0
        %572 = vmatpush1.bf16.msra.mxu0 %v552
        %573 = vmatprep.subr.bf16.mxu0 0
        %574 = vmatpush1.bf16.msra.mxu0 %v553
        %575 = vmatprep.subr.bf16.mxu0 0
        %576 = vmatpush1.bf16.msra.mxu0 %v554
        %577 = vmatprep.subr.bf16.mxu0 0
        %578 = vmatpush1.bf16.msra.mxu0 %v555
        %579 = vmatprep.subr.bf16.mxu0 0
        %580 = vmatpush1.bf16.msra.mxu0 %v556
        %581 = vmatprep.subr.bf16.mxu0 0
        %582 = vmatpush1.bf16.msra.mxu0 0
        %583 = vmatprep.subr.bf16.mxu0 0
        %584 = vmatpush1.bf16.msra.mxu0 0
        %585 = vmatprep.subr.bf16.mxu0 0
        %586 = vmatpush1.bf16.msra.mxu0 0
        %587 = vmatprep.subr.bf16.mxu0 0
        %588 = vmatpush1.bf16.msra.mxu0 0
        %589 = vmatprep.subr.bf16.mxu0 0
        %590 = vmatpush1.bf16.msra.mxu0 0
        %591 = vmatprep.subr.bf16.mxu0 0
        %592 = vmatpush1.bf16.msra.mxu0 0
        %593 = vmatprep.subr.bf16.mxu0 0
        %594 = vmatpush1.bf16.msra.mxu0 0
        %595 = vmatprep.subr.bf16.mxu0 0
        %596 = vmatpush1.bf16.msra.mxu0 0
        %597 = vmatprep.mubr.bf16.mxu0 0
        %598 = vmatmul.mubr.bf16.gmra.mrb[0].mxu0 %v499
        %v599 = vpop.f32.mrb[0].mxu0
        %v600 = vadd.f32 0.0, %v599
        %v601 = vpop.f32.mrb[0].mxu0
        %v602 = vpop.f32.mrb[0].mxu0
        %v603 = vpop.f32.mrb[0].mxu0
        %604 = vdwg.mxu0
        %v605 = vadd.f32 %v489, %v600
        %606 = vset.pattern.permute.xlu0 3
        %607 = vperm.xlu0 %606, %v270
        %v608 = vpop.permute.xlu0 %607
        %vm609 = vcmp.eq.s32.totalorder %v608, %v272
        %v610 = vsel %vm609, 1.0, 0.0
        %v611 = vpack.c.bf16 %v610, %v610
        %s612 = scalar_lea.vmem [#allocation4], 192
        %v613 = vld [vmem:[%s612] sm:$0xf]
        %v614 = vld [vmem:[%s612 + $0x4] sm:$0xf]
        %v615 = vld [vmem:[%s612 + $0x8] sm:$0xf]
        %v616 = vld [vmem:[%s612 + $0xc] sm:$0xf]
        %v617 = vld [vmem:[%s612 + $0x10] sm:$0xf]
        %v618 = vld [vmem:[%s612 + $0x14] sm:$0xf]
        %v619 = vld [vmem:[%s612 + $0x18] sm:$0xf]
        %v620 = vld [vmem:[%s612 + $0x1c] sm:$0xf]
        %v621 = vld [vmem:[%s612 + $0x20] sm:$0xf]
        %v622 = vld [vmem:[%s612 + $0x24] sm:$0xf]
        %v623 = vld [vmem:[%s612 + $0x28] sm:$0xf]
        %v624 = vld [vmem:[%s612 + $0x2c] sm:$0xf]
        %v625 = vld [vmem:[%s612 + $0x30] sm:$0xf]
        %v626 = vld [vmem:[%s612 + $0x34] sm:$0xf]
        %v627 = vld [vmem:[%s612 + $0x38] sm:$0xf]
        %v628 = vld [vmem:[%s612 + $0x3c] sm:$0xf]
        %v645 = vunpack.c.l.b16 %v613
        %v646 = vunpack.c.l.b16 %v614
        %v647 = vunpack.c.l.b16 %v615
        %v648 = vunpack.c.l.b16 %v616
        %v649 = vunpack.c.l.b16 %v617
        %v650 = vunpack.c.l.b16 %v618
        %v651 = vunpack.c.l.b16 %v619
        %v652 = vunpack.c.l.b16 %v620
        %v653 = vunpack.c.l.b16 %v621
        %v654 = vunpack.c.l.b16 %v622
        %v655 = vunpack.c.l.b16 %v623
        %v656 = vunpack.c.l.b16 %v624
        %v657 = vunpack.c.l.b16 %v625
        %v658 = vunpack.c.l.b16 %v626
        %v659 = vunpack.c.l.b16 %v627
        %v660 = vunpack.c.l.b16 %v628
        %v661 = vpack.c.b16 %v646, %v645
        %v662 = vpack.c.b16 %v648, %v647
        %v663 = vpack.c.b16 %v650, %v649
        %v664 = vpack.c.b16 %v652, %v651
        %v665 = vpack.c.b16 %v654, %v653
        %v666 = vpack.c.b16 %v656, %v655
        %v667 = vpack.c.b16 %v658, %v657
        %v668 = vpack.c.b16 %v660, %v659
        %677 = vmatprep.subr.bf16.mxu0 0
        %678 = vmatpush1.bf16.msra.mxu0 %v661
        %679 = vmatprep.subr.bf16.mxu0 0
        %680 = vmatpush1.bf16.msra.mxu0 %v662
        %681 = vmatprep.subr.bf16.mxu0 0
        %682 = vmatpush1.bf16.msra.mxu0 %v663
        %683 = vmatprep.subr.bf16.mxu0 0
        %684 = vmatpush1.bf16.msra.mxu0 %v664
        %685 = vmatprep.subr.bf16.mxu0 0
        %686 = vmatpush1.bf16.msra.mxu0 %v665
        %687 = vmatprep.subr.bf16.mxu0 0
        %688 = vmatpush1.bf16.msra.mxu0 %v666
        %689 = vmatprep.subr.bf16.mxu0 0
        %690 = vmatpush1.bf16.msra.mxu0 %v667
        %691 = vmatprep.subr.bf16.mxu0 0
        %692 = vmatpush1.bf16.msra.mxu0 %v668
        %693 = vmatprep.subr.bf16.mxu0 0
        %694 = vmatpush1.bf16.msra.mxu0 0
        %695 = vmatprep.subr.bf16.mxu0 0
        %696 = vmatpush1.bf16.msra.mxu0 0
        %697 = vmatprep.subr.bf16.mxu0 0
        %698 = vmatpush1.bf16.msra.mxu0 0
        %699 = vmatprep.subr.bf16.mxu0 0
        %700 = vmatpush1.bf16.msra.mxu0 0
        %701 = vmatprep.subr.bf16.mxu0 0
        %702 = vmatpush1.bf16.msra.mxu0 0
        %703 = vmatprep.subr.bf16.mxu0 0
        %704 = vmatpush1.bf16.msra.mxu0 0
        %705 = vmatprep.subr.bf16.mxu0 0
        %706 = vmatpush1.bf16.msra.mxu0 0
        %707 = vmatprep.subr.bf16.mxu0 0
        %708 = vmatpush1.bf16.msra.mxu0 0
        %709 = vmatprep.mubr.bf16.mxu0 0
        %710 = vmatmul.mubr.bf16.gmra.mrb[0].mxu0 %v611
        %v711 = vpop.f32.mrb[0].mxu0
        %v712 = vadd.f32 0.0, %v711
        %v713 = vpop.f32.mrb[0].mxu0
        %v714 = vpop.f32.mrb[0].mxu0
        %v715 = vpop.f32.mrb[0].mxu0
        %716 = vdwg.mxu0
        %v717 = vadd.f32 %v605, %v712
        %718 = vset.pattern.permute.xlu0 4
        %719 = vperm.xlu0 %718, %v270
        %v720 = vpop.permute.xlu0 %719
        %vm721 = vcmp.eq.s32.totalorder %v720, %v272
        %v722 = vsel %vm721, 1.0, 0.0
        %v723 = vpack.c.bf16 %v722, %v722
        %s724 = scalar_lea.vmem [#allocation4], 256
        %v725 = vld [vmem:[%s724] sm:$0xf]
        %v726 = vld [vmem:[%s724 + $0x4] sm:$0xf]
        %v727 = vld [vmem:[%s724 + $0x8] sm:$0xf]
        %v728 = vld [vmem:[%s724 + $0xc] sm:$0xf]
        %v729 = vld [vmem:[%s724 + $0x10] sm:$0xf]
        %v730 = vld [vmem:[%s724 + $0x14] sm:$0xf]
        %v731 = vld [vmem:[%s724 + $0x18] sm:$0xf]
        %v732 = vld [vmem:[%s724 + $0x1c] sm:$0xf]
        %v733 = vld [vmem:[%s724 + $0x20] sm:$0xf]
        %v734 = vld [vmem:[%s724 + $0x24] sm:$0xf]
        %v735 = vld [vmem:[%s724 + $0x28] sm:$0xf]
        %v736 = vld [vmem:[%s724 + $0x2c] sm:$0xf]
        %v737 = vld [vmem:[%s724 + $0x30] sm:$0xf]
        %v738 = vld [vmem:[%s724 + $0x34] sm:$0xf]
        %v739 = vld [vmem:[%s724 + $0x38] sm:$0xf]
        %v740 = vld [vmem:[%s724 + $0x3c] sm:$0xf]
        %v757 = vunpack.c.l.b16 %v725
        %v758 = vunpack.c.l.b16 %v726
        %v759 = vunpack.c.l.b16 %v727
        %v760 = vunpack.c.l.b16 %v728
        %v761 = vunpack.c.l.b16 %v729
        %v762 = vunpack.c.l.b16 %v730
        %v763 = vunpack.c.l.b16 %v731
        %v764 = vunpack.c.l.b16 %v732
        %v765 = vunpack.c.l.b16 %v733
        %v766 = vunpack.c.l.b16 %v734
        %v767 = vunpack.c.l.b16 %v735
        %v768 = vunpack.c.l.b16 %v736
        %v769 = vunpack.c.l.b16 %v737
        %v770 = vunpack.c.l.b16 %v738
        %v771 = vunpack.c.l.b16 %v739
        %v772 = vunpack.c.l.b16 %v740
        %v773 = vpack.c.b16 %v758, %v757
        %v774 = vpack.c.b16 %v760, %v759
        %v775 = vpack.c.b16 %v762, %v761
        %v776 = vpack.c.b16 %v764, %v763
        %v777 = vpack.c.b16 %v766, %v765
        %v778 = vpack.c.b16 %v768, %v767
        %v779 = vpack.c.b16 %v770, %v769
        %v780 = vpack.c.b16 %v772, %v771
        %789 = vmatprep.subr.bf16.mxu0 0
        %790 = vmatpush1.bf16.msra.mxu0 %v773
        %791 = vmatprep.subr.bf16.mxu0 0
        %792 = vmatpush1.bf16.msra.mxu0 %v774
        %793 = vmatprep.subr.bf16.mxu0 0
        %794 = vmatpush1.bf16.msra.mxu0 %v775
        %795 = vmatprep.subr.bf16.mxu0 0
        %796 = vmatpush1.bf16.msra.mxu0 %v776
        %797 = vmatprep.subr.bf16.mxu0 0
        %798 = vmatpush1.bf16.msra.mxu0 %v777
        %799 = vmatprep.subr.bf16.mxu0 0
        %800 = vmatpush1.bf16.msra.mxu0 %v778
        %801 = vmatprep.subr.bf16.mxu0 0
        %802 = vmatpush1.bf16.msra.mxu0 %v779
        %803 = vmatprep.subr.bf16.mxu0 0
        %804 = vmatpush1.bf16.msra.mxu0 %v780
        %805 = vmatprep.subr.bf16.mxu0 0
        %806 = vmatpush1.bf16.msra.mxu0 0
        %807 = vmatprep.subr.bf16.mxu0 0
        %808 = vmatpush1.bf16.msra.mxu0 0
        %809 = vmatprep.subr.bf16.mxu0 0
        %810 = vmatpush1.bf16.msra.mxu0 0
        %811 = vmatprep.subr.bf16.mxu0 0
        %812 = vmatpush1.bf16.msra.mxu0 0
        %813 = vmatprep.subr.bf16.mxu0 0
        %814 = vmatpush1.bf16.msra.mxu0 0
        %815 = vmatprep.subr.bf16.mxu0 0
        %816 = vmatpush1.bf16.msra.mxu0 0
        %817 = vmatprep.subr.bf16.mxu0 0
        %818 = vmatpush1.bf16.msra.mxu0 0
        %819 = vmatprep.subr.bf16.mxu0 0
        %820 = vmatpush1.bf16.msra.mxu0 0
        %821 = vmatprep.mubr.bf16.mxu0 0
        %822 = vmatmul.mubr.bf16.gmra.mrb[0].mxu0 %v723
        %v823 = vpop.f32.mrb[0].mxu0
        %v824 = vadd.f32 0.0, %v823
        %v825 = vpop.f32.mrb[0].mxu0
        %v826 = vpop.f32.mrb[0].mxu0
        %v827 = vpop.f32.mrb[0].mxu0
        %828 = vdwg.mxu0
        %v829 = vadd.f32 %v717, %v824
        %830 = vset.pattern.permute.xlu0 5
        %831 = vperm.xlu0 %830, %v270
        %v832 = vpop.permute.xlu0 %831
        %vm833 = vcmp.eq.s32.totalorder %v832, %v272
        %v834 = vsel %vm833, 1.0, 0.0
        %v835 = vpack.c.bf16 %v834, %v834
        %s836 = scalar_lea.vmem [#allocation4], 320
        %v837 = vld [vmem:[%s836] sm:$0xf]
        %v838 = vld [vmem:[%s836 + $0x4] sm:$0xf]
        %v839 = vld [vmem:[%s836 + $0x8] sm:$0xf]
        %v840 = vld [vmem:[%s836 + $0xc] sm:$0xf]
        %v841 = vld [vmem:[%s836 + $0x10] sm:$0xf]
        %v842 = vld [vmem:[%s836 + $0x14] sm:$0xf]
        %v843 = vld [vmem:[%s836 + $0x18] sm:$0xf]
        %v844 = vld [vmem:[%s836 + $0x1c] sm:$0xf]
        %v845 = vld [vmem:[%s836 + $0x20] sm:$0xf]
        %v846 = vld [vmem:[%s836 + $0x24] sm:$0xf]
        %v847 = vld [vmem:[%s836 + $0x28] sm:$0xf]
        %v848 = vld [vmem:[%s836 + $0x2c] sm:$0xf]
        %v849 = vld [vmem:[%s836 + $0x30] sm:$0xf]
        %v850 = vld [vmem:[%s836 + $0x34] sm:$0xf]
        %v851 = vld [vmem:[%s836 + $0x38] sm:$0xf]
        %v852 = vld [vmem:[%s836 + $0x3c] sm:$0xf]
        %v869 = vunpack.c.l.b16 %v837
        %v870 = vunpack.c.l.b16 %v838
        %v871 = vunpack.c.l.b16 %v839
        %v872 = vunpack.c.l.b16 %v840
        %v873 = vunpack.c.l.b16 %v841
        %v874 = vunpack.c.l.b16 %v842
        %v875 = vunpack.c.l.b16 %v843
        %v876 = vunpack.c.l.b16 %v844
        %v877 = vunpack.c.l.b16 %v845
        %v878 = vunpack.c.l.b16 %v846
        %v879 = vunpack.c.l.b16 %v847
        %v880 = vunpack.c.l.b16 %v848
        %v881 = vunpack.c.l.b16 %v849
        %v882 = vunpack.c.l.b16 %v850
        %v883 = vunpack.c.l.b16 %v851
        %v884 = vunpack.c.l.b16 %v852
        %v885 = vpack.c.b16 %v870, %v869
        %v886 = vpack.c.b16 %v872, %v871
        %v887 = vpack.c.b16 %v874, %v873
        %v888 = vpack.c.b16 %v876, %v875
        %v889 = vpack.c.b16 %v878, %v877
        %v890 = vpack.c.b16 %v880, %v879
        %v891 = vpack.c.b16 %v882, %v881
        %v892 = vpack.c.b16 %v884, %v883
        %901 = vmatprep.subr.bf16.mxu0 0
        %902 = vmatpush1.bf16.msra.mxu0 %v885
        %903 = vmatprep.subr.bf16.mxu0 0
        %904 = vmatpush1.bf16.msra.mxu0 %v886
        %905 = vmatprep.subr.bf16.mxu0 0
        %906 = vmatpush1.bf16.msra.mxu0 %v887
        %907 = vmatprep.subr.bf16.mxu0 0
        %908 = vmatpush1.bf16.msra.mxu0 %v888
        %909 = vmatprep.subr.bf16.mxu0 0
        %910 = vmatpush1.bf16.msra.mxu0 %v889
        %911 = vmatprep.subr.bf16.mxu0 0
        %912 = vmatpush1.bf16.msra.mxu0 %v890
        %913 = vmatprep.subr.bf16.mxu0 0
        %914 = vmatpush1.bf16.msra.mxu0 %v891
        %915 = vmatprep.subr.bf16.mxu0 0
        %916 = vmatpush1.bf16.msra.mxu0 %v892
        %917 = vmatprep.subr.bf16.mxu0 0
        %918 = vmatpush1.bf16.msra.mxu0 0
        %919 = vmatprep.subr.bf16.mxu0 0
        %920 = vmatpush1.bf16.msra.mxu0 0
        %921 = vmatprep.subr.bf16.mxu0 0
        %922 = vmatpush1.bf16.msra.mxu0 0
        %923 = vmatprep.subr.bf16.mxu0 0
        %924 = vmatpush1.bf16.msra.mxu0 0
        %925 = vmatprep.subr.bf16.mxu0 0
        %926 = vmatpush1.bf16.msra.mxu0 0
        %927 = vmatprep.subr.bf16.mxu0 0
        %928 = vmatpush1.bf16.msra.mxu0 0
        %929 = vmatprep.subr.bf16.mxu0 0
        %930 = vmatpush1.bf16.msra.mxu0 0
        %931 = vmatprep.subr.bf16.mxu0 0
        %932 = vmatpush1.bf16.msra.mxu0 0
        %933 = vmatprep.mubr.bf16.mxu0 0
        %934 = vmatmul.mubr.bf16.gmra.mrb[0].mxu0 %v835
        %v935 = vpop.f32.mrb[0].mxu0
        %v936 = vadd.f32 0.0, %v935
        %v937 = vpop.f32.mrb[0].mxu0
        %v938 = vpop.f32.mrb[0].mxu0
        %v939 = vpop.f32.mrb[0].mxu0
        %940 = vdwg.mxu0
        %v941 = vadd.f32 %v829, %v936
        %942 = vset.pattern.permute.xlu0 6
        %943 = vperm.xlu0 %942, %v270
        %v944 = vpop.permute.xlu0 %943
        %vm945 = vcmp.eq.s32.totalorder %v944, %v272
        %v946 = vsel %vm945, 1.0, 0.0
        %v947 = vpack.c.bf16 %v946, %v946
        %s948 = scalar_lea.vmem [#allocation4], 384
        %v949 = vld [vmem:[%s948] sm:$0xf]
        %v950 = vld [vmem:[%s948 + $0x4] sm:$0xf]
        %v951 = vld [vmem:[%s948 + $0x8] sm:$0xf]
        %v952 = vld [vmem:[%s948 + $0xc] sm:$0xf]
        %v953 = vld [vmem:[%s948 + $0x10] sm:$0xf]
        %v954 = vld [vmem:[%s948 + $0x14] sm:$0xf]
        %v955 = vld [vmem:[%s948 + $0x18] sm:$0xf]
        %v956 = vld [vmem:[%s948 + $0x1c] sm:$0xf]
        %v957 = vld [vmem:[%s948 + $0x20] sm:$0xf]
        %v958 = vld [vmem:[%s948 + $0x24] sm:$0xf]
        %v959 = vld [vmem:[%s948 + $0x28] sm:$0xf]
        %v960 = vld [vmem:[%s948 + $0x2c] sm:$0xf]
        %v961 = vld [vmem:[%s948 + $0x30] sm:$0xf]
        %v962 = vld [vmem:[%s948 + $0x34] sm:$0xf]
        %v963 = vld [vmem:[%s948 + $0x38] sm:$0xf]
        %v964 = vld [vmem:[%s948 + $0x3c] sm:$0xf]
        %v981 = vunpack.c.l.b16 %v949
        %v982 = vunpack.c.l.b16 %v950
        %v983 = vunpack.c.l.b16 %v951
        %v984 = vunpack.c.l.b16 %v952
        %v985 = vunpack.c.l.b16 %v953
        %v986 = vunpack.c.l.b16 %v954
        %v987 = vunpack.c.l.b16 %v955
        %v988 = vunpack.c.l.b16 %v956
        %v989 = vunpack.c.l.b16 %v957
        %v990 = vunpack.c.l.b16 %v958
        %v991 = vunpack.c.l.b16 %v959
        %v992 = vunpack.c.l.b16 %v960
        %v993 = vunpack.c.l.b16 %v961
        %v994 = vunpack.c.l.b16 %v962
        %v995 = vunpack.c.l.b16 %v963
        %v996 = vunpack.c.l.b16 %v964
        %v997 = vpack.c.b16 %v982, %v981
        %v998 = vpack.c.b16 %v984, %v983
        %v999 = vpack.c.b16 %v986, %v985
        %v1000 = vpack.c.b16 %v988, %v987
        %v1001 = vpack.c.b16 %v990, %v989
        %v1002 = vpack.c.b16 %v992, %v991
        %v1003 = vpack.c.b16 %v994, %v993
        %v1004 = vpack.c.b16 %v996, %v995
        %1013 = vmatprep.subr.bf16.mxu0 0
        %1014 = vmatpush1.bf16.msra.mxu0 %v997
        %1015 = vmatprep.subr.bf16.mxu0 0
        %1016 = vmatpush1.bf16.msra.mxu0 %v998
        %1017 = vmatprep.subr.bf16.mxu0 0
        %1018 = vmatpush1.bf16.msra.mxu0 %v999
        %1019 = vmatprep.subr.bf16.mxu0 0
        %1020 = vmatpush1.bf16.msra.mxu0 %v1000
        %1021 = vmatprep.subr.bf16.mxu0 0
        %1022 = vmatpush1.bf16.msra.mxu0 %v1001
        %1023 = vmatprep.subr.bf16.mxu0 0
        %1024 = vmatpush1.bf16.msra.mxu0 %v1002
        %1025 = vmatprep.subr.bf16.mxu0 0
        %1026 = vmatpush1.bf16.msra.mxu0 %v1003
        %1027 = vmatprep.subr.bf16.mxu0 0
        %1028 = vmatpush1.bf16.msra.mxu0 %v1004
        %1029 = vmatprep.subr.bf16.mxu0 0
        %1030 = vmatpush1.bf16.msra.mxu0 0
        %1031 = vmatprep.subr.bf16.mxu0 0
        %1032 = vmatpush1.bf16.msra.mxu0 0
        %1033 = vmatprep.subr.bf16.mxu0 0
        %1034 = vmatpush1.bf16.msra.mxu0 0
        %1035 = vmatprep.subr.bf16.mxu0 0
        %1036 = vmatpush1.bf16.msra.mxu0 0
        %1037 = vmatprep.subr.bf16.mxu0 0
        %1038 = vmatpush1.bf16.msra.mxu0 0
        %1039 = vmatprep.subr.bf16.mxu0 0
        %1040 = vmatpush1.bf16.msra.mxu0 0
        %1041 = vmatprep.subr.bf16.mxu0 0
        %1042 = vmatpush1.bf16.msra.mxu0 0
        %1043 = vmatprep.subr.bf16.mxu0 0
        %1044 = vmatpush1.bf16.msra.mxu0 0
        %1045 = vmatprep.mubr.bf16.mxu0 0
        %1046 = vmatmul.mubr.bf16.gmra.mrb[0].mxu0 %v947
        %v1047 = vpop.f32.mrb[0].mxu0
        %v1048 = vadd.f32 0.0, %v1047
        %v1049 = vpop.f32.mrb[0].mxu0
        %v1050 = vpop.f32.mrb[0].mxu0
        %v1051 = vpop.f32.mrb[0].mxu0
        %1052 = vdwg.mxu0
        %v1053 = vadd.f32 %v941, %v1048
        %1054 = vset.pattern.permute.xlu0 7
        %1055 = vperm.xlu0 %1054, %v270
        %v1056 = vpop.permute.xlu0 %1055
        %vm1057 = vcmp.eq.s32.totalorder %v1056, %v272
        %v1058 = vsel %vm1057, 1.0, 0.0
        %v1059 = vpack.c.bf16 %v1058, %v1058
        %s1060 = scalar_lea.vmem [#allocation4], 448
        %v1061 = vld [vmem:[%s1060] sm:$0xf]
        %v1062 = vld [vmem:[%s1060 + $0x4] sm:$0xf]
        %v1063 = vld [vmem:[%s1060 + $0x8] sm:$0xf]
        %v1064 = vld [vmem:[%s1060 + $0xc] sm:$0xf]
        %v1065 = vld [vmem:[%s1060 + $0x10] sm:$0xf]
        %v1066 = vld [vmem:[%s1060 + $0x14] sm:$0xf]
        %v1067 = vld [vmem:[%s1060 + $0x18] sm:$0xf]
        %v1068 = vld [vmem:[%s1060 + $0x1c] sm:$0xf]
        %v1069 = vld [vmem:[%s1060 + $0x20] sm:$0xf]
        %v1070 = vld [vmem:[%s1060 + $0x24] sm:$0xf]
        %v1071 = vld [vmem:[%s1060 + $0x28] sm:$0xf]
        %v1072 = vld [vmem:[%s1060 + $0x2c] sm:$0xf]
        %v1073 = vld [vmem:[%s1060 + $0x30] sm:$0xf]
        %v1074 = vld [vmem:[%s1060 + $0x34] sm:$0xf]
        %v1075 = vld [vmem:[%s1060 + $0x38] sm:$0xf]
        %v1076 = vld [vmem:[%s1060 + $0x3c] sm:$0xf]
        %v1093 = vunpack.c.l.b16 %v1061
        %v1094 = vunpack.c.l.b16 %v1062
        %v1095 = vunpack.c.l.b16 %v1063
        %v1096 = vunpack.c.l.b16 %v1064
        %v1097 = vunpack.c.l.b16 %v1065
        %v1098 = vunpack.c.l.b16 %v1066
        %v1099 = vunpack.c.l.b16 %v1067
        %v1100 = vunpack.c.l.b16 %v1068
        %v1101 = vunpack.c.l.b16 %v1069
        %v1102 = vunpack.c.l.b16 %v1070
        %v1103 = vunpack.c.l.b16 %v1071
        %v1104 = vunpack.c.l.b16 %v1072
        %v1105 = vunpack.c.l.b16 %v1073
        %v1106 = vunpack.c.l.b16 %v1074
        %v1107 = vunpack.c.l.b16 %v1075
        %v1108 = vunpack.c.l.b16 %v1076
        %v1109 = vpack.c.b16 %v1094, %v1093
        %v1110 = vpack.c.b16 %v1096, %v1095
        %v1111 = vpack.c.b16 %v1098, %v1097
        %v1112 = vpack.c.b16 %v1100, %v1099
        %v1113 = vpack.c.b16 %v1102, %v1101
        %v1114 = vpack.c.b16 %v1104, %v1103
        %v1115 = vpack.c.b16 %v1106, %v1105
        %v1116 = vpack.c.b16 %v1108, %v1107
        %1125 = vmatprep.subr.bf16.mxu0 0
        %1126 = vmatpush1.bf16.msra.mxu0 %v1109
        %1127 = vmatprep.subr.bf16.mxu0 0
        %1128 = vmatpush1.bf16.msra.mxu0 %v1110
        %1129 = vmatprep.subr.bf16.mxu0 0
        %1130 = vmatpush1.bf16.msra.mxu0 %v1111
        %1131 = vmatprep.subr.bf16.mxu0 0
        %1132 = vmatpush1.bf16.msra.mxu0 %v1112
        %1133 = vmatprep.subr.bf16.mxu0 0
        %1134 = vmatpush1.bf16.msra.mxu0 %v1113
        %1135 = vmatprep.subr.bf16.mxu0 0
        %1136 = vmatpush1.bf16.msra.mxu0 %v1114
        %1137 = vmatprep.subr.bf16.mxu0 0
        %1138 = vmatpush1.bf16.msra.mxu0 %v1115
        %1139 = vmatprep.subr.bf16.mxu0 0
        %1140 = vmatpush1.bf16.msra.mxu0 %v1116
        %1141 = vmatprep.subr.bf16.mxu0 0
        %1142 = vmatpush1.bf16.msra.mxu0 0
        %1143 = vmatprep.subr.bf16.mxu0 0
        %1144 = vmatpush1.bf16.msra.mxu0 0
        %1145 = vmatprep.subr.bf16.mxu0 0
        %1146 = vmatpush1.bf16.msra.mxu0 0
        %1147 = vmatprep.subr.bf16.mxu0 0
        %1148 = vmatpush1.bf16.msra.mxu0 0
        %1149 = vmatprep.subr.bf16.mxu0 0
        %1150 = vmatpush1.bf16.msra.mxu0 0
        %1151 = vmatprep.subr.bf16.mxu0 0
        %1152 = vmatpush1.bf16.msra.mxu0 0
        %1153 = vmatprep.subr.bf16.mxu0 0
        %1154 = vmatpush1.bf16.msra.mxu0 0
        %1155 = vmatprep.subr.bf16.mxu0 0
        %1156 = vmatpush1.bf16.msra.mxu0 0
        %1157 = vmatprep.mubr.bf16.mxu0 0
        %1158 = vmatmul.mubr.bf16.gmra.mrb[0].mxu0 %v1059
        %v1159 = vpop.f32.mrb[0].mxu0
        %v1160 = vadd.f32 0.0, %v1159
        %v1161 = vpop.f32.mrb[0].mxu0
        %v1162 = vpop.f32.mrb[0].mxu0
        %v1163 = vpop.f32.mrb[0].mxu0
        %1164 = vdwg.mxu0
        %v1165 = vadd.f32 %v1053, %v1160
        %1166 = vset.pattern.permute.xlu0 8
        %1167 = vperm.xlu0 %1166, %v270
        %v1168 = vpop.permute.xlu0 %1167
        %vm1169 = vcmp.eq.s32.totalorder %v1168, %v272
        %v1170 = vsel %vm1169, 1.0, 0.0
        %v1171 = vpack.c.bf16 %v1170, %v1170
        %s1172 = scalar_lea.vmem [#allocation4], 512
        %v1173 = vld [vmem:[%s1172] sm:$0xf]
        %v1174 = vld [vmem:[%s1172 + $0x4] sm:$0xf]
        %v1175 = vld [vmem:[%s1172 + $0x8] sm:$0xf]
        %v1176 = vld [vmem:[%s1172 + $0xc] sm:$0xf]
        %v1177 = vld [vmem:[%s1172 + $0x10] sm:$0xf]
        %v1178 = vld [vmem:[%s1172 + $0x14] sm:$0xf]
        %v1179 = vld [vmem:[%s1172 + $0x18] sm:$0xf]
        %v1180 = vld [vmem:[%s1172 + $0x1c] sm:$0xf]
        %v1181 = vld [vmem:[%s1172 + $0x20] sm:$0xf]
        %v1182 = vld [vmem:[%s1172 + $0x24] sm:$0xf]
        %v1183 = vld [vmem:[%s1172 + $0x28] sm:$0xf]
        %v1184 = vld [vmem:[%s1172 + $0x2c] sm:$0xf]
        %v1185 = vld [vmem:[%s1172 + $0x30] sm:$0xf]
        %v1186 = vld [vmem:[%s1172 + $0x34] sm:$0xf]
        %v1187 = vld [vmem:[%s1172 + $0x38] sm:$0xf]
        %v1188 = vld [vmem:[%s1172 + $0x3c] sm:$0xf]
        %v1205 = vunpack.c.l.b16 %v1173
        %v1206 = vunpack.c.l.b16 %v1174
        %v1207 = vunpack.c.l.b16 %v1175
        %v1208 = vunpack.c.l.b16 %v1176
        %v1209 = vunpack.c.l.b16 %v1177
        %v1210 = vunpack.c.l.b16 %v1178
        %v1211 = vunpack.c.l.b16 %v1179
        %v1212 = vunpack.c.l.b16 %v1180
        %v1213 = vunpack.c.l.b16 %v1181
        %v1214 = vunpack.c.l.b16 %v1182
        %v1215 = vunpack.c.l.b16 %v1183
        %v1216 = vunpack.c.l.b16 %v1184
        %v1217 = vunpack.c.l.b16 %v1185
        %v1218 = vunpack.c.l.b16 %v1186
        %v1219 = vunpack.c.l.b16 %v1187
        %v1220 = vunpack.c.l.b16 %v1188
        %v1221 = vpack.c.b16 %v1206, %v1205
        %v1222 = vpack.c.b16 %v1208, %v1207
        %v1223 = vpack.c.b16 %v1210, %v1209
        %v1224 = vpack.c.b16 %v1212, %v1211
        %v1225 = vpack.c.b16 %v1214, %v1213
        %v1226 = vpack.c.b16 %v1216, %v1215
        %v1227 = vpack.c.b16 %v1218, %v1217
        %v1228 = vpack.c.b16 %v1220, %v1219
        %1237 = vmatprep.subr.bf16.mxu0 0
        %1238 = vmatpush1.bf16.msra.mxu0 %v1221
        %1239 = vmatprep.subr.bf16.mxu0 0
        %1240 = vmatpush1.bf16.msra.mxu0 %v1222
        %1241 = vmatprep.subr.bf16.mxu0 0
        %1242 = vmatpush1.bf16.msra.mxu0 %v1223
        %1243 = vmatprep.subr.bf16.mxu0 0
        %1244 = vmatpush1.bf16.msra.mxu0 %v1224
        %1245 = vmatprep.subr.bf16.mxu0 0
        %1246 = vmatpush1.bf16.msra.mxu0 %v1225
        %1247 = vmatprep.subr.bf16.mxu0 0
        %1248 = vmatpush1.bf16.msra.mxu0 %v1226
        %1249 = vmatprep.subr.bf16.mxu0 0
        %1250 = vmatpush1.bf16.msra.mxu0 %v1227
        %1251 = vmatprep.subr.bf16.mxu0 0
        %1252 = vmatpush1.bf16.msra.mxu0 %v1228
        %1253 = vmatprep.subr.bf16.mxu0 0
        %1254 = vmatpush1.bf16.msra.mxu0 0
        %1255 = vmatprep.subr.bf16.mxu0 0
        %1256 = vmatpush1.bf16.msra.mxu0 0
        %1257 = vmatprep.subr.bf16.mxu0 0
        %1258 = vmatpush1.bf16.msra.mxu0 0
        %1259 = vmatprep.subr.bf16.mxu0 0
        %1260 = vmatpush1.bf16.msra.mxu0 0
        %1261 = vmatprep.subr.bf16.mxu0 0
        %1262 = vmatpush1.bf16.msra.mxu0 0
        %1263 = vmatprep.subr.bf16.mxu0 0
        %1264 = vmatpush1.bf16.msra.mxu0 0
        %1265 = vmatprep.subr.bf16.mxu0 0
        %1266 = vmatpush1.bf16.msra.mxu0 0
        %1267 = vmatprep.subr.bf16.mxu0 0
        %1268 = vmatpush1.bf16.msra.mxu0 0
        %1269 = vmatprep.mubr.bf16.mxu0 0
        %1270 = vmatmul.mubr.bf16.gmra.mrb[0].mxu0 %v1171
        %v1271 = vpop.f32.mrb[0].mxu0
        %v1272 = vadd.f32 0.0, %v1271
        %v1273 = vpop.f32.mrb[0].mxu0
        %v1274 = vpop.f32.mrb[0].mxu0
        %v1275 = vpop.f32.mrb[0].mxu0
        %1276 = vdwg.mxu0
        %v1277 = vadd.f32 %v1165, %v1272
        %1278 = vset.pattern.permute.xlu0 9
        %1279 = vperm.xlu0 %1278, %v270
        %v1280 = vpop.permute.xlu0 %1279
        %vm1281 = vcmp.eq.s32.totalorder %v1280, %v272
        %v1282 = vsel %vm1281, 1.0, 0.0
        %v1283 = vpack.c.bf16 %v1282, %v1282
        %s1284 = scalar_lea.vmem [#allocation4], 576
        %v1285 = vld [vmem:[%s1284] sm:$0xf]
        %v1286 = vld [vmem:[%s1284 + $0x4] sm:$0xf]
        %v1287 = vld [vmem:[%s1284 + $0x8] sm:$0xf]
        %v1288 = vld [vmem:[%s1284 + $0xc] sm:$0xf]
        %v1289 = vld [vmem:[%s1284 + $0x10] sm:$0xf]
        %v1290 = vld [vmem:[%s1284 + $0x14] sm:$0xf]
        %v1291 = vld [vmem:[%s1284 + $0x18] sm:$0xf]
        %v1292 = vld [vmem:[%s1284 + $0x1c] sm:$0xf]
        %v1293 = vld [vmem:[%s1284 + $0x20] sm:$0xf]
        %v1294 = vld [vmem:[%s1284 + $0x24] sm:$0xf]
        %v1295 = vld [vmem:[%s1284 + $0x28] sm:$0xf]
        %v1296 = vld [vmem:[%s1284 + $0x2c] sm:$0xf]
        %v1297 = vld [vmem:[%s1284 + $0x30] sm:$0xf]
        %v1298 = vld [vmem:[%s1284 + $0x34] sm:$0xf]
        %v1299 = vld [vmem:[%s1284 + $0x38] sm:$0xf]
        %v1300 = vld [vmem:[%s1284 + $0x3c] sm:$0xf]
        %v1317 = vunpack.c.l.b16 %v1285
        %v1318 = vunpack.c.l.b16 %v1286
        %v1319 = vunpack.c.l.b16 %v1287
        %v1320 = vunpack.c.l.b16 %v1288
        %v1321 = vunpack.c.l.b16 %v1289
        %v1322 = vunpack.c.l.b16 %v1290
        %v1323 = vunpack.c.l.b16 %v1291
        %v1324 = vunpack.c.l.b16 %v1292
        %v1325 = vunpack.c.l.b16 %v1293
        %v1326 = vunpack.c.l.b16 %v1294
        %v1327 = vunpack.c.l.b16 %v1295
        %v1328 = vunpack.c.l.b16 %v1296
        %v1329 = vunpack.c.l.b16 %v1297
        %v1330 = vunpack.c.l.b16 %v1298
        %v1331 = vunpack.c.l.b16 %v1299
        %v1332 = vunpack.c.l.b16 %v1300
        %v1333 = vpack.c.b16 %v1318, %v1317
        %v1334 = vpack.c.b16 %v1320, %v1319
        %v1335 = vpack.c.b16 %v1322, %v1321
        %v1336 = vpack.c.b16 %v1324, %v1323
        %v1337 = vpack.c.b16 %v1326, %v1325
        %v1338 = vpack.c.b16 %v1328, %v1327
        %v1339 = vpack.c.b16 %v1330, %v1329
        %v1340 = vpack.c.b16 %v1332, %v1331
        %1349 = vmatprep.subr.bf16.mxu0 0
        %1350 = vmatpush1.bf16.msra.mxu0 %v1333
        %1351 = vmatprep.subr.bf16.mxu0 0
        %1352 = vmatpush1.bf16.msra.mxu0 %v1334
        %1353 = vmatprep.subr.bf16.mxu0 0
        %1354 = vmatpush1.bf16.msra.mxu0 %v1335
        %1355 = vmatprep.subr.bf16.mxu0 0
        %1356 = vmatpush1.bf16.msra.mxu0 %v1336
        %1357 = vmatprep.subr.bf16.mxu0 0
        %1358 = vmatpush1.bf16.msra.mxu0 %v1337
        %1359 = vmatprep.subr.bf16.mxu0 0
        %1360 = vmatpush1.bf16.msra.mxu0 %v1338
        %1361 = vmatprep.subr.bf16.mxu0 0
        %1362 = vmatpush1.bf16.msra.mxu0 %v1339
        %1363 = vmatprep.subr.bf16.mxu0 0
        %1364 = vmatpush1.bf16.msra.mxu0 %v1340
        %1365 = vmatprep.subr.bf16.mxu0 0
        %1366 = vmatpush1.bf16.msra.mxu0 0
        %1367 = vmatprep.subr.bf16.mxu0 0
        %1368 = vmatpush1.bf16.msra.mxu0 0
        %1369 = vmatprep.subr.bf16.mxu0 0
        %1370 = vmatpush1.bf16.msra.mxu0 0
        %1371 = vmatprep.subr.bf16.mxu0 0
        %1372 = vmatpush1.bf16.msra.mxu0 0
        %1373 = vmatprep.subr.bf16.mxu0 0
        %1374 = vmatpush1.bf16.msra.mxu0 0
        %1375 = vmatprep.subr.bf16.mxu0 0
        %1376 = vmatpush1.bf16.msra.mxu0 0
        %1377 = vmatprep.subr.bf16.mxu0 0
        %1378 = vmatpush1.bf16.msra.mxu0 0
        %1379 = vmatprep.subr.bf16.mxu0 0
        %1380 = vmatpush1.bf16.msra.mxu0 0
        %1381 = vmatprep.mubr.bf16.mxu0 0
        %1382 = vmatmul.mubr.bf16.gmra.mrb[0].mxu0 %v1283
        %v1383 = vpop.f32.mrb[0].mxu0
        %v1384 = vadd.f32 0.0, %v1383
        %v1385 = vpop.f32.mrb[0].mxu0
        %v1386 = vpop.f32.mrb[0].mxu0
        %v1387 = vpop.f32.mrb[0].mxu0
        %1388 = vdwg.mxu0
        %v1389 = vadd.f32 %v1277, %v1384
        %1390 = vset.pattern.permute.xlu0 10
        %1391 = vperm.xlu0 %1390, %v270
        %v1392 = vpop.permute.xlu0 %1391
        %vm1393 = vcmp.eq.s32.totalorder %v1392, %v272
        %v1394 = vsel %vm1393, 1.0, 0.0
        %v1395 = vpack.c.bf16 %v1394, %v1394
        %s1396 = scalar_lea.vmem [#allocation4], 640
        %v1397 = vld [vmem:[%s1396] sm:$0xf]
        %v1398 = vld [vmem:[%s1396 + $0x4] sm:$0xf]
        %v1399 = vld [vmem:[%s1396 + $0x8] sm:$0xf]
        %v1400 = vld [vmem:[%s1396 + $0xc] sm:$0xf]
        %v1401 = vld [vmem:[%s1396 + $0x10] sm:$0xf]
        %v1402 = vld [vmem:[%s1396 + $0x14] sm:$0xf]
        %v1403 = vld [vmem:[%s1396 + $0x18] sm:$0xf]
        %v1404 = vld [vmem:[%s1396 + $0x1c] sm:$0xf]
        %v1405 = vld [vmem:[%s1396 + $0x20] sm:$0xf]
        %v1406 = vld [vmem:[%s1396 + $0x24] sm:$0xf]
        %v1407 = vld [vmem:[%s1396 + $0x28] sm:$0xf]
        %v1408 = vld [vmem:[%s1396 + $0x2c] sm:$0xf]
        %v1409 = vld [vmem:[%s1396 + $0x30] sm:$0xf]
        %v1410 = vld [vmem:[%s1396 + $0x34] sm:$0xf]
        %v1411 = vld [vmem:[%s1396 + $0x38] sm:$0xf]
        %v1412 = vld [vmem:[%s1396 + $0x3c] sm:$0xf]
        %v1429 = vunpack.c.l.b16 %v1397
        %v1430 = vunpack.c.l.b16 %v1398
        %v1431 = vunpack.c.l.b16 %v1399
        %v1432 = vunpack.c.l.b16 %v1400
        %v1433 = vunpack.c.l.b16 %v1401
        %v1434 = vunpack.c.l.b16 %v1402
        %v1435 = vunpack.c.l.b16 %v1403
        %v1436 = vunpack.c.l.b16 %v1404
        %v1437 = vunpack.c.l.b16 %v1405
        %v1438 = vunpack.c.l.b16 %v1406
        %v1439 = vunpack.c.l.b16 %v1407
        %v1440 = vunpack.c.l.b16 %v1408
        %v1441 = vunpack.c.l.b16 %v1409
        %v1442 = vunpack.c.l.b16 %v1410
        %v1443 = vunpack.c.l.b16 %v1411
        %v1444 = vunpack.c.l.b16 %v1412
        %v1445 = vpack.c.b16 %v1430, %v1429
        %v1446 = vpack.c.b16 %v1432, %v1431
        %v1447 = vpack.c.b16 %v1434, %v1433
        %v1448 = vpack.c.b16 %v1436, %v1435
        %v1449 = vpack.c.b16 %v1438, %v1437
        %v1450 = vpack.c.b16 %v1440, %v1439
        %v1451 = vpack.c.b16 %v1442, %v1441
        %v1452 = vpack.c.b16 %v1444, %v1443
        %1461 = vmatprep.subr.bf16.mxu0 0
        %1462 = vmatpush1.bf16.msra.mxu0 %v1445
        %1463 = vmatprep.subr.bf16.mxu0 0
        %1464 = vmatpush1.bf16.msra.mxu0 %v1446
        %1465 = vmatprep.subr.bf16.mxu0 0
        %1466 = vmatpush1.bf16.msra.mxu0 %v1447
        %1467 = vmatprep.subr.bf16.mxu0 0
        %1468 = vmatpush1.bf16.msra.mxu0 %v1448
        %1469 = vmatprep.subr.bf16.mxu0 0
        %1470 = vmatpush1.bf16.msra.mxu0 %v1449
        %1471 = vmatprep.subr.bf16.mxu0 0
        %1472 = vmatpush1.bf16.msra.mxu0 %v1450
        %1473 = vmatprep.subr.bf16.mxu0 0
        %1474 = vmatpush1.bf16.msra.mxu0 %v1451
        %1475 = vmatprep.subr.bf16.mxu0 0
        %1476 = vmatpush1.bf16.msra.mxu0 %v1452
        %1477 = vmatprep.subr.bf16.mxu0 0
        %1478 = vmatpush1.bf16.msra.mxu0 0
        %1479 = vmatprep.subr.bf16.mxu0 0
        %1480 = vmatpush1.bf16.msra.mxu0 0
        %1481 = vmatprep.subr.bf16.mxu0 0
        %1482 = vmatpush1.bf16.msra.mxu0 0
        %1483 = vmatprep.subr.bf16.mxu0 0
        %1484 = vmatpush1.bf16.msra.mxu0 0
        %1485 = vmatprep.subr.bf16.mxu0 0
        %1486 = vmatpush1.bf16.msra.mxu0 0
        %1487 = vmatprep.subr.bf16.mxu0 0
        %1488 = vmatpush1.bf16.msra.mxu0 0
        %1489 = vmatprep.subr.bf16.mxu0 0
        %1490 = vmatpush1.bf16.msra.mxu0 0
        %1491 = vmatprep.subr.bf16.mxu0 0
        %1492 = vmatpush1.bf16.msra.mxu0 0
        %1493 = vmatprep.mubr.bf16.mxu0 0
        %1494 = vmatmul.mubr.bf16.gmra.mrb[0].mxu0 %v1395
        %v1495 = vpop.f32.mrb[0].mxu0
        %v1496 = vadd.f32 0.0, %v1495
        %v1497 = vpop.f32.mrb[0].mxu0
        %v1498 = vpop.f32.mrb[0].mxu0
        %v1499 = vpop.f32.mrb[0].mxu0
        %1500 = vdwg.mxu0
        %v1501 = vadd.f32 %v1389, %v1496
        %1502 = vset.pattern.permute.xlu0 11
        %1503 = vperm.xlu0 %1502, %v270
        %v1504 = vpop.permute.xlu0 %1503
        %vm1505 = vcmp.eq.s32.totalorder %v1504, %v272
        %v1506 = vsel %vm1505, 1.0, 0.0
        %v1507 = vpack.c.bf16 %v1506, %v1506
        %s1508 = scalar_lea.vmem [#allocation4], 704
        %v1509 = vld [vmem:[%s1508] sm:$0xf]
        %v1510 = vld [vmem:[%s1508 + $0x4] sm:$0xf]
        %v1511 = vld [vmem:[%s1508 + $0x8] sm:$0xf]
        %v1512 = vld [vmem:[%s1508 + $0xc] sm:$0xf]
        %v1513 = vld [vmem:[%s1508 + $0x10] sm:$0xf]
        %v1514 = vld [vmem:[%s1508 + $0x14] sm:$0xf]
        %v1515 = vld [vmem:[%s1508 + $0x18] sm:$0xf]
        %v1516 = vld [vmem:[%s1508 + $0x1c] sm:$0xf]
        %v1517 = vld [vmem:[%s1508 + $0x20] sm:$0xf]
        %v1518 = vld [vmem:[%s1508 + $0x24] sm:$0xf]
        %v1519 = vld [vmem:[%s1508 + $0x28] sm:$0xf]
        %v1520 = vld [vmem:[%s1508 + $0x2c] sm:$0xf]
        %v1521 = vld [vmem:[%s1508 + $0x30] sm:$0xf]
        %v1522 = vld [vmem:[%s1508 + $0x34] sm:$0xf]
        %v1523 = vld [vmem:[%s1508 + $0x38] sm:$0xf]
        %v1524 = vld [vmem:[%s1508 + $0x3c] sm:$0xf]
        %v1541 = vunpack.c.l.b16 %v1509
        %v1542 = vunpack.c.l.b16 %v1510
        %v1543 = vunpack.c.l.b16 %v1511
        %v1544 = vunpack.c.l.b16 %v1512
        %v1545 = vunpack.c.l.b16 %v1513
        %v1546 = vunpack.c.l.b16 %v1514
        %v1547 = vunpack.c.l.b16 %v1515
        %v1548 = vunpack.c.l.b16 %v1516
        %v1549 = vunpack.c.l.b16 %v1517
        %v1550 = vunpack.c.l.b16 %v1518
        %v1551 = vunpack.c.l.b16 %v1519
        %v1552 = vunpack.c.l.b16 %v1520
        %v1553 = vunpack.c.l.b16 %v1521
        %v1554 = vunpack.c.l.b16 %v1522
        %v1555 = vunpack.c.l.b16 %v1523
        %v1556 = vunpack.c.l.b16 %v1524
        %v1557 = vpack.c.b16 %v1542, %v1541
        %v1558 = vpack.c.b16 %v1544, %v1543
        %v1559 = vpack.c.b16 %v1546, %v1545
        %v1560 = vpack.c.b16 %v1548, %v1547
        %v1561 = vpack.c.b16 %v1550, %v1549
        %v1562 = vpack.c.b16 %v1552, %v1551
        %v1563 = vpack.c.b16 %v1554, %v1553
        %v1564 = vpack.c.b16 %v1556, %v1555
        %1573 = vmatprep.subr.bf16.mxu0 0
        %1574 = vmatpush1.bf16.msra.mxu0 %v1557
        %1575 = vmatprep.subr.bf16.mxu0 0
        %1576 = vmatpush1.bf16.msra.mxu0 %v1558
        %1577 = vmatprep.subr.bf16.mxu0 0
        %1578 = vmatpush1.bf16.msra.mxu0 %v1559
        %1579 = vmatprep.subr.bf16.mxu0 0
        %1580 = vmatpush1.bf16.msra.mxu0 %v1560
        %1581 = vmatprep.subr.bf16.mxu0 0
        %1582 = vmatpush1.bf16.msra.mxu0 %v1561
        %1583 = vmatprep.subr.bf16.mxu0 0
        %1584 = vmatpush1.bf16.msra.mxu0 %v1562
        %1585 = vmatprep.subr.bf16.mxu0 0
        %1586 = vmatpush1.bf16.msra.mxu0 %v1563
        %1587 = vmatprep.subr.bf16.mxu0 0
        %1588 = vmatpush1.bf16.msra.mxu0 %v1564
        %1589 = vmatprep.subr.bf16.mxu0 0
        %1590 = vmatpush1.bf16.msra.mxu0 0
        %1591 = vmatprep.subr.bf16.mxu0 0
        %1592 = vmatpush1.bf16.msra.mxu0 0
        %1593 = vmatprep.subr.bf16.mxu0 0
        %1594 = vmatpush1.bf16.msra.mxu0 0
        %1595 = vmatprep.subr.bf16.mxu0 0
        %1596 = vmatpush1.bf16.msra.mxu0 0
        %1597 = vmatprep.subr.bf16.mxu0 0
        %1598 = vmatpush1.bf16.msra.mxu0 0
        %1599 = vmatprep.subr.bf16.mxu0 0
        %1600 = vmatpush1.bf16.msra.mxu0 0
        %1601 = vmatprep.subr.bf16.mxu0 0
        %1602 = vmatpush1.bf16.msra.mxu0 0
        %1603 = vmatprep.subr.bf16.mxu0 0
        %1604 = vmatpush1.bf16.msra.mxu0 0
        %1605 = vmatprep.mubr.bf16.mxu0 0
        %1606 = vmatmul.mubr.bf16.gmra.mrb[0].mxu0 %v1507
        %v1607 = vpop.f32.mrb[0].mxu0
        %v1608 = vadd.f32 0.0, %v1607
        %v1609 = vpop.f32.mrb[0].mxu0
        %v1610 = vpop.f32.mrb[0].mxu0
        %v1611 = vpop.f32.mrb[0].mxu0
        %1612 = vdwg.mxu0
        %v1613 = vadd.f32 %v1501, %v1608
        %1614 = vset.pattern.permute.xlu0 12
        %1615 = vperm.xlu0 %1614, %v270
        %v1616 = vpop.permute.xlu0 %1615
        %vm1617 = vcmp.eq.s32.totalorder %v1616, %v272
        %v1618 = vsel %vm1617, 1.0, 0.0
        %v1619 = vpack.c.bf16 %v1618, %v1618
        %s1620 = scalar_lea.vmem [#allocation4], 768
        %v1621 = vld [vmem:[%s1620] sm:$0xf]
        %v1622 = vld [vmem:[%s1620 + $0x4] sm:$0xf]
        %v1623 = vld [vmem:[%s1620 + $0x8] sm:$0xf]
        %v1624 = vld [vmem:[%s1620 + $0xc] sm:$0xf]
        %v1625 = vld [vmem:[%s1620 + $0x10] sm:$0xf]
        %v1626 = vld [vmem:[%s1620 + $0x14] sm:$0xf]
        %v1627 = vld [vmem:[%s1620 + $0x18] sm:$0xf]
        %v1628 = vld [vmem:[%s1620 + $0x1c] sm:$0xf]
        %v1629 = vld [vmem:[%s1620 + $0x20] sm:$0xf]
        %v1630 = vld [vmem:[%s1620 + $0x24] sm:$0xf]
        %v1631 = vld [vmem:[%s1620 + $0x28] sm:$0xf]
        %v1632 = vld [vmem:[%s1620 + $0x2c] sm:$0xf]
        %v1633 = vld [vmem:[%s1620 + $0x30] sm:$0xf]
        %v1634 = vld [vmem:[%s1620 + $0x34] sm:$0xf]
        %v1635 = vld [vmem:[%s1620 + $0x38] sm:$0xf]
        %v1636 = vld [vmem:[%s1620 + $0x3c] sm:$0xf]
        %v1653 = vunpack.c.l.b16 %v1621
        %v1654 = vunpack.c.l.b16 %v1622
        %v1655 = vunpack.c.l.b16 %v1623
        %v1656 = vunpack.c.l.b16 %v1624
        %v1657 = vunpack.c.l.b16 %v1625
        %v1658 = vunpack.c.l.b16 %v1626
        %v1659 = vunpack.c.l.b16 %v1627
        %v1660 = vunpack.c.l.b16 %v1628
        %v1661 = vunpack.c.l.b16 %v1629
        %v1662 = vunpack.c.l.b16 %v1630
        %v1663 = vunpack.c.l.b16 %v1631
        %v1664 = vunpack.c.l.b16 %v1632
        %v1665 = vunpack.c.l.b16 %v1633
        %v1666 = vunpack.c.l.b16 %v1634
        %v1667 = vunpack.c.l.b16 %v1635
        %v1668 = vunpack.c.l.b16 %v1636
        %v1669 = vpack.c.b16 %v1654, %v1653
        %v1670 = vpack.c.b16 %v1656, %v1655
        %v1671 = vpack.c.b16 %v1658, %v1657
        %v1672 = vpack.c.b16 %v1660, %v1659
        %v1673 = vpack.c.b16 %v1662, %v1661
        %v1674 = vpack.c.b16 %v1664, %v1663
        %v1675 = vpack.c.b16 %v1666, %v1665
        %v1676 = vpack.c.b16 %v1668, %v1667
        %1685 = vmatprep.subr.bf16.mxu0 0
        %1686 = vmatpush1.bf16.msra.mxu0 %v1669
        %1687 = vmatprep.subr.bf16.mxu0 0
        %1688 = vmatpush1.bf16.msra.mxu0 %v1670
        %1689 = vmatprep.subr.bf16.mxu0 0
        %1690 = vmatpush1.bf16.msra.mxu0 %v1671
        %1691 = vmatprep.subr.bf16.mxu0 0
        %1692 = vmatpush1.bf16.msra.mxu0 %v1672
        %1693 = vmatprep.subr.bf16.mxu0 0
        %1694 = vmatpush1.bf16.msra.mxu0 %v1673
        %1695 = vmatprep.subr.bf16.mxu0 0
        %1696 = vmatpush1.bf16.msra.mxu0 %v1674
        %1697 = vmatprep.subr.bf16.mxu0 0
        %1698 = vmatpush1.bf16.msra.mxu0 %v1675
        %1699 = vmatprep.subr.bf16.mxu0 0
        %1700 = vmatpush1.bf16.msra.mxu0 %v1676
        %1701 = vmatprep.subr.bf16.mxu0 0
        %1702 = vmatpush1.bf16.msra.mxu0 0
        %1703 = vmatprep.subr.bf16.mxu0 0
        %1704 = vmatpush1.bf16.msra.mxu0 0
        %1705 = vmatprep.subr.bf16.mxu0 0
        %1706 = vmatpush1.bf16.msra.mxu0 0
        %1707 = vmatprep.subr.bf16.mxu0 0
        %1708 = vmatpush1.bf16.msra.mxu0 0
        %1709 = vmatprep.subr.bf16.mxu0 0
        %1710 = vmatpush1.bf16.msra.mxu0 0
        %1711 = vmatprep.subr.bf16.mxu0 0
        %1712 = vmatpush1.bf16.msra.mxu0 0
        %1713 = vmatprep.subr.bf16.mxu0 0
        %1714 = vmatpush1.bf16.msra.mxu0 0
        %1715 = vmatprep.subr.bf16.mxu0 0
        %1716 = vmatpush1.bf16.msra.mxu0 0
        %1717 = vmatprep.mubr.bf16.mxu0 0
        %1718 = vmatmul.mubr.bf16.gmra.mrb[0].mxu0 %v1619
        %v1719 = vpop.f32.mrb[0].mxu0
        %v1720 = vadd.f32 0.0, %v1719
        %v1721 = vpop.f32.mrb[0].mxu0
        %v1722 = vpop.f32.mrb[0].mxu0
        %v1723 = vpop.f32.mrb[0].mxu0
        %1724 = vdwg.mxu0
        %v1725 = vadd.f32 %v1613, %v1720
        %1726 = vset.pattern.permute.xlu0 13
        %1727 = vperm.xlu0 %1726, %v270
        %v1728 = vpop.permute.xlu0 %1727
        %vm1729 = vcmp.eq.s32.totalorder %v1728, %v272
        %v1730 = vsel %vm1729, 1.0, 0.0
        %v1731 = vpack.c.bf16 %v1730, %v1730
        %s1732 = scalar_lea.vmem [#allocation4], 832
        %v1733 = vld [vmem:[%s1732] sm:$0xf]
        %v1734 = vld [vmem:[%s1732 + $0x4] sm:$0xf]
        %v1735 = vld [vmem:[%s1732 + $0x8] sm:$0xf]
        %v1736 = vld [vmem:[%s1732 + $0xc] sm:$0xf]
        %v1737 = vld [vmem:[%s1732 + $0x10] sm:$0xf]
        %v1738 = vld [vmem:[%s1732 + $0x14] sm:$0xf]
        %v1739 = vld [vmem:[%s1732 + $0x18] sm:$0xf]
        %v1740 = vld [vmem:[%s1732 + $0x1c] sm:$0xf]
        %v1741 = vld [vmem:[%s1732 + $0x20] sm:$0xf]
        %v1742 = vld [vmem:[%s1732 + $0x24] sm:$0xf]
        %v1743 = vld [vmem:[%s1732 + $0x28] sm:$0xf]
        %v1744 = vld [vmem:[%s1732 + $0x2c] sm:$0xf]
        %v1745 = vld [vmem:[%s1732 + $0x30] sm:$0xf]
        %v1746 = vld [vmem:[%s1732 + $0x34] sm:$0xf]
        %v1747 = vld [vmem:[%s1732 + $0x38] sm:$0xf]
        %v1748 = vld [vmem:[%s1732 + $0x3c] sm:$0xf]
        %v1765 = vunpack.c.l.b16 %v1733
        %v1766 = vunpack.c.l.b16 %v1734
        %v1767 = vunpack.c.l.b16 %v1735
        %v1768 = vunpack.c.l.b16 %v1736
        %v1769 = vunpack.c.l.b16 %v1737
        %v1770 = vunpack.c.l.b16 %v1738
        %v1771 = vunpack.c.l.b16 %v1739
        %v1772 = vunpack.c.l.b16 %v1740
        %v1773 = vunpack.c.l.b16 %v1741
        %v1774 = vunpack.c.l.b16 %v1742
        %v1775 = vunpack.c.l.b16 %v1743
        %v1776 = vunpack.c.l.b16 %v1744
        %v1777 = vunpack.c.l.b16 %v1745
        %v1778 = vunpack.c.l.b16 %v1746
        %v1779 = vunpack.c.l.b16 %v1747
        %v1780 = vunpack.c.l.b16 %v1748
        %v1781 = vpack.c.b16 %v1766, %v1765
        %v1782 = vpack.c.b16 %v1768, %v1767
        %v1783 = vpack.c.b16 %v1770, %v1769
        %v1784 = vpack.c.b16 %v1772, %v1771
        %v1785 = vpack.c.b16 %v1774, %v1773
        %v1786 = vpack.c.b16 %v1776, %v1775
        %v1787 = vpack.c.b16 %v1778, %v1777
        %v1788 = vpack.c.b16 %v1780, %v1779
        %1797 = vmatprep.subr.bf16.mxu0 0
        %1798 = vmatpush1.bf16.msra.mxu0 %v1781
        %1799 = vmatprep.subr.bf16.mxu0 0
        %1800 = vmatpush1.bf16.msra.mxu0 %v1782
        %1801 = vmatprep.subr.bf16.mxu0 0
        %1802 = vmatpush1.bf16.msra.mxu0 %v1783
        %1803 = vmatprep.subr.bf16.mxu0 0
        %1804 = vmatpush1.bf16.msra.mxu0 %v1784
        %1805 = vmatprep.subr.bf16.mxu0 0
        %1806 = vmatpush1.bf16.msra.mxu0 %v1785
        %1807 = vmatprep.subr.bf16.mxu0 0
        %1808 = vmatpush1.bf16.msra.mxu0 %v1786
        %1809 = vmatprep.subr.bf16.mxu0 0
        %1810 = vmatpush1.bf16.msra.mxu0 %v1787
        %1811 = vmatprep.subr.bf16.mxu0 0
        %1812 = vmatpush1.bf16.msra.mxu0 %v1788
        %1813 = vmatprep.subr.bf16.mxu0 0
        %1814 = vmatpush1.bf16.msra.mxu0 0
        %1815 = vmatprep.subr.bf16.mxu0 0
        %1816 = vmatpush1.bf16.msra.mxu0 0
        %1817 = vmatprep.subr.bf16.mxu0 0
        %1818 = vmatpush1.bf16.msra.mxu0 0
        %1819 = vmatprep.subr.bf16.mxu0 0
        %1820 = vmatpush1.bf16.msra.mxu0 0
        %1821 = vmatprep.subr.bf16.mxu0 0
        %1822 = vmatpush1.bf16.msra.mxu0 0
        %1823 = vmatprep.subr.bf16.mxu0 0
        %1824 = vmatpush1.bf16.msra.mxu0 0
        %1825 = vmatprep.subr.bf16.mxu0 0
        %1826 = vmatpush1.bf16.msra.mxu0 0
        %1827 = vmatprep.subr.bf16.mxu0 0
        %1828 = vmatpush1.bf16.msra.mxu0 0
        %1829 = vmatprep.mubr.bf16.mxu0 0
        %1830 = vmatmul.mubr.bf16.gmra.mrb[0].mxu0 %v1731
        %v1831 = vpop.f32.mrb[0].mxu0
        %v1832 = vadd.f32 0.0, %v1831
        %v1833 = vpop.f32.mrb[0].mxu0
        %v1834 = vpop.f32.mrb[0].mxu0
        %v1835 = vpop.f32.mrb[0].mxu0
        %1836 = vdwg.mxu0
        %v1837 = vadd.f32 %v1725, %v1832
        %1838 = vset.pattern.permute.xlu0 14
        %1839 = vperm.xlu0 %1838, %v270
        %v1840 = vpop.permute.xlu0 %1839
        %vm1841 = vcmp.eq.s32.totalorder %v1840, %v272
        %v1842 = vsel %vm1841, 1.0, 0.0
        %v1843 = vpack.c.bf16 %v1842, %v1842
        %s1844 = scalar_lea.vmem [#allocation4], 896
        %v1845 = vld [vmem:[%s1844] sm:$0xf]
        %v1846 = vld [vmem:[%s1844 + $0x4] sm:$0xf]
        %v1847 = vld [vmem:[%s1844 + $0x8] sm:$0xf]
        %v1848 = vld [vmem:[%s1844 + $0xc] sm:$0xf]
        %v1849 = vld [vmem:[%s1844 + $0x10] sm:$0xf]
        %v1850 = vld [vmem:[%s1844 + $0x14] sm:$0xf]
        %v1851 = vld [vmem:[%s1844 + $0x18] sm:$0xf]
        %v1852 = vld [vmem:[%s1844 + $0x1c] sm:$0xf]
        %v1853 = vld [vmem:[%s1844 + $0x20] sm:$0xf]
        %v1854 = vld [vmem:[%s1844 + $0x24] sm:$0xf]
        %v1855 = vld [vmem:[%s1844 + $0x28] sm:$0xf]
        %v1856 = vld [vmem:[%s1844 + $0x2c] sm:$0xf]
        %v1857 = vld [vmem:[%s1844 + $0x30] sm:$0xf]
        %v1858 = vld [vmem:[%s1844 + $0x34] sm:$0xf]
        %v1859 = vld [vmem:[%s1844 + $0x38] sm:$0xf]
        %v1860 = vld [vmem:[%s1844 + $0x3c] sm:$0xf]
        %v1877 = vunpack.c.l.b16 %v1845
        %v1878 = vunpack.c.l.b16 %v1846
        %v1879 = vunpack.c.l.b16 %v1847
        %v1880 = vunpack.c.l.b16 %v1848
        %v1881 = vunpack.c.l.b16 %v1849
        %v1882 = vunpack.c.l.b16 %v1850
        %v1883 = vunpack.c.l.b16 %v1851
        %v1884 = vunpack.c.l.b16 %v1852
        %v1885 = vunpack.c.l.b16 %v1853
        %v1886 = vunpack.c.l.b16 %v1854
        %v1887 = vunpack.c.l.b16 %v1855
        %v1888 = vunpack.c.l.b16 %v1856
        %v1889 = vunpack.c.l.b16 %v1857
        %v1890 = vunpack.c.l.b16 %v1858
        %v1891 = vunpack.c.l.b16 %v1859
        %v1892 = vunpack.c.l.b16 %v1860
        %v1893 = vpack.c.b16 %v1878, %v1877
        %v1894 = vpack.c.b16 %v1880, %v1879
        %v1895 = vpack.c.b16 %v1882, %v1881
        %v1896 = vpack.c.b16 %v1884, %v1883
        %v1897 = vpack.c.b16 %v1886, %v1885
        %v1898 = vpack.c.b16 %v1888, %v1887
        %v1899 = vpack.c.b16 %v1890, %v1889
        %v1900 = vpack.c.b16 %v1892, %v1891
        %1909 = vmatprep.subr.bf16.mxu0 0
        %1910 = vmatpush1.bf16.msra.mxu0 %v1893
        %1911 = vmatprep.subr.bf16.mxu0 0
        %1912 = vmatpush1.bf16.msra.mxu0 %v1894
        %1913 = vmatprep.subr.bf16.mxu0 0
        %1914 = vmatpush1.bf16.msra.mxu0 %v1895
        %1915 = vmatprep.subr.bf16.mxu0 0
        %1916 = vmatpush1.bf16.msra.mxu0 %v1896
        %1917 = vmatprep.subr.bf16.mxu0 0
        %1918 = vmatpush1.bf16.msra.mxu0 %v1897
        %1919 = vmatprep.subr.bf16.mxu0 0
        %1920 = vmatpush1.bf16.msra.mxu0 %v1898
        %1921 = vmatprep.subr.bf16.mxu0 0
        %1922 = vmatpush1.bf16.msra.mxu0 %v1899
        %1923 = vmatprep.subr.bf16.mxu0 0
        %1924 = vmatpush1.bf16.msra.mxu0 %v1900
        %1925 = vmatprep.subr.bf16.mxu0 0
        %1926 = vmatpush1.bf16.msra.mxu0 0
        %1927 = vmatprep.subr.bf16.mxu0 0
        %1928 = vmatpush1.bf16.msra.mxu0 0
        %1929 = vmatprep.subr.bf16.mxu0 0
        %1930 = vmatpush1.bf16.msra.mxu0 0
        %1931 = vmatprep.subr.bf16.mxu0 0
        %1932 = vmatpush1.bf16.msra.mxu0 0
        %1933 = vmatprep.subr.bf16.mxu0 0
        %1934 = vmatpush1.bf16.msra.mxu0 0
        %1935 = vmatprep.subr.bf16.mxu0 0
        %1936 = vmatpush1.bf16.msra.mxu0 0
        %1937 = vmatprep.subr.bf16.mxu0 0
        %1938 = vmatpush1.bf16.msra.mxu0 0
        %1939 = vmatprep.subr.bf16.mxu0 0
        %1940 = vmatpush1.bf16.msra.mxu0 0
        %1941 = vmatprep.mubr.bf16.mxu0 0
        %1942 = vmatmul.mubr.bf16.gmra.mrb[0].mxu0 %v1843
        %v1943 = vpop.f32.mrb[0].mxu0
        %v1944 = vadd.f32 0.0, %v1943
        %v1945 = vpop.f32.mrb[0].mxu0
        %v1946 = vpop.f32.mrb[0].mxu0
        %v1947 = vpop.f32.mrb[0].mxu0
        %1948 = vdwg.mxu0
        %v1949 = vadd.f32 %v1837, %v1944
        %1950 = vset.pattern.permute.xlu0 15
        %1951 = vperm.xlu0 %1950, %v270
        %v1952 = vpop.permute.xlu0 %1951
        %vm1953 = vcmp.eq.s32.totalorder %v1952, %v272
        %v1954 = vsel %vm1953, 1.0, 0.0
        %v1955 = vpack.c.bf16 %v1954, %v1954
        %s1956 = scalar_lea.vmem [#allocation4], 960
        %v1957 = vld [vmem:[%s1956] sm:$0xf]
        %v1958 = vld [vmem:[%s1956 + $0x4] sm:$0xf]
        %v1959 = vld [vmem:[%s1956 + $0x8] sm:$0xf]
        %v1960 = vld [vmem:[%s1956 + $0xc] sm:$0xf]
        %v1961 = vld [vmem:[%s1956 + $0x10] sm:$0xf]
        %v1962 = vld [vmem:[%s1956 + $0x14] sm:$0xf]
        %v1963 = vld [vmem:[%s1956 + $0x18] sm:$0xf]
        %v1964 = vld [vmem:[%s1956 + $0x1c] sm:$0xf]
        %v1965 = vld [vmem:[%s1956 + $0x20] sm:$0xf]
        %v1966 = vld [vmem:[%s1956 + $0x24] sm:$0xf]
        %v1967 = vld [vmem:[%s1956 + $0x28] sm:$0xf]
        %v1968 = vld [vmem:[%s1956 + $0x2c] sm:$0xf]
        %v1969 = vld [vmem:[%s1956 + $0x30] sm:$0xf]
        %v1970 = vld [vmem:[%s1956 + $0x34] sm:$0xf]
        %v1971 = vld [vmem:[%s1956 + $0x38] sm:$0xf]
        %v1972 = vld [vmem:[%s1956 + $0x3c] sm:$0xf]
        %v1989 = vunpack.c.l.b16 %v1957
        %v1990 = vunpack.c.l.b16 %v1958
        %v1991 = vunpack.c.l.b16 %v1959
        %v1992 = vunpack.c.l.b16 %v1960
        %v1993 = vunpack.c.l.b16 %v1961
        %v1994 = vunpack.c.l.b16 %v1962
        %v1995 = vunpack.c.l.b16 %v1963
        %v1996 = vunpack.c.l.b16 %v1964
        %v1997 = vunpack.c.l.b16 %v1965
        %v1998 = vunpack.c.l.b16 %v1966
        %v1999 = vunpack.c.l.b16 %v1967
        %v2000 = vunpack.c.l.b16 %v1968
        %v2001 = vunpack.c.l.b16 %v1969
        %v2002 = vunpack.c.l.b16 %v1970
        %v2003 = vunpack.c.l.b16 %v1971
        %v2004 = vunpack.c.l.b16 %v1972
        %v2005 = vpack.c.b16 %v1990, %v1989
        %v2006 = vpack.c.b16 %v1992, %v1991
        %v2007 = vpack.c.b16 %v1994, %v1993
        %v2008 = vpack.c.b16 %v1996, %v1995
        %v2009 = vpack.c.b16 %v1998, %v1997
        %v2010 = vpack.c.b16 %v2000, %v1999
        %v2011 = vpack.c.b16 %v2002, %v2001
        %v2012 = vpack.c.b16 %v2004, %v2003
        %2021 = vmatprep.subr.bf16.mxu0 0
        %2022 = vmatpush1.bf16.msra.mxu0 %v2005
        %2023 = vmatprep.subr.bf16.mxu0 0
        %2024 = vmatpush1.bf16.msra.mxu0 %v2006
        %2025 = vmatprep.subr.bf16.mxu0 0
        %2026 = vmatpush1.bf16.msra.mxu0 %v2007
        %2027 = vmatprep.subr.bf16.mxu0 0
        %2028 = vmatpush1.bf16.msra.mxu0 %v2008
        %2029 = vmatprep.subr.bf16.mxu0 0
        %2030 = vmatpush1.bf16.msra.mxu0 %v2009
        %2031 = vmatprep.subr.bf16.mxu0 0
        %2032 = vmatpush1.bf16.msra.mxu0 %v2010
        %2033 = vmatprep.subr.bf16.mxu0 0
        %2034 = vmatpush1.bf16.msra.mxu0 %v2011
        %2035 = vmatprep.subr.bf16.mxu0 0
        %2036 = vmatpush1.bf16.msra.mxu0 %v2012
        %2037 = vmatprep.subr.bf16.mxu0 0
        %2038 = vmatpush1.bf16.msra.mxu0 0
        %2039 = vmatprep.subr.bf16.mxu0 0
        %2040 = vmatpush1.bf16.msra.mxu0 0
        %2041 = vmatprep.subr.bf16.mxu0 0
        %2042 = vmatpush1.bf16.msra.mxu0 0
        %2043 = vmatprep.subr.bf16.mxu0 0
        %2044 = vmatpush1.bf16.msra.mxu0 0
        %2045 = vmatprep.subr.bf16.mxu0 0
        %2046 = vmatpush1.bf16.msra.mxu0 0
        %2047 = vmatprep.subr.bf16.mxu0 0
        %2048 = vmatpush1.bf16.msra.mxu0 0
        %2049 = vmatprep.subr.bf16.mxu0 0
        %2050 = vmatpush1.bf16.msra.mxu0 0
        %2051 = vmatprep.subr.bf16.mxu0 0
        %2052 = vmatpush1.bf16.msra.mxu0 0
        %2053 = vmatprep.mubr.bf16.mxu0 0
        %2054 = vmatmul.mubr.bf16.gmra.mrb[0].mxu0 %v1955
        %v2055 = vpop.f32.mrb[0].mxu0
        %v2056 = vadd.f32 0.0, %v2055
        %v2057 = vpop.f32.mrb[0].mxu0
        %v2058 = vpop.f32.mrb[0].mxu0
        %v2059 = vpop.f32.mrb[0].mxu0
        %2060 = vdwg.mxu0
        %v2061 = vadd.f32 %v1949, %v2056
        %v2062 = vld [vmem:[%s2] sm:$0x1]
        %v2064 = vlaneseq
        %v2065 = vshrl.u32 %v2064, 7
        %v2066 = vsub.s32 0, %v2065
        %v2067 = vrot.slane %v2062, %v2066
        %v2069 = vadd.f32 %v2061, %v2067
        %v2070 = vmax.f32 %v2069, 0.0
        %v2071 = vpack.c.bf16 %v2070, %v2070
        %v2072 = vld [vmem:[#allocation6] sm:$0xf]
        %v2073 = vld [vmem:[#allocation6 + $0x4] sm:$0xf]
        %v2074 = vld [vmem:[#allocation6 + $0x8] sm:$0xf]
        %v2075 = vld [vmem:[#allocation6 + $0xc] sm:$0xf]
        %v2076 = vld [vmem:[#allocation6 + $0x10] sm:$0xf]
        %v2077 = vld [vmem:[#allocation6 + $0x14] sm:$0xf]
        %v2078 = vld [vmem:[#allocation6 + $0x18] sm:$0xf]
        %v2079 = vld [vmem:[#allocation6 + $0x1c] sm:$0xf]
        %v2080 = vld [vmem:[#allocation6 + $0x20] sm:$0xf]
        %v2081 = vld [vmem:[#allocation6 + $0x24] sm:$0xf]
        %v2082 = vld [vmem:[#allocation6 + $0x28] sm:$0xf]
        %v2083 = vld [vmem:[#allocation6 + $0x2c] sm:$0xf]
        %v2084 = vld [vmem:[#allocation6 + $0x30] sm:$0xf]
        %v2085 = vld [vmem:[#allocation6 + $0x34] sm:$0xf]
        %v2086 = vld [vmem:[#allocation6 + $0x38] sm:$0xf]
        %v2087 = vld [vmem:[#allocation6 + $0x3c] sm:$0xf]
        %v2088 = vld [vmem:[%s4] sm:$0x1]
        %v2090 = vlaneseq
        %v2091 = vshrl.u32 %v2090, 7
        %v2092 = vsub.s32 0, %v2091
        %v2093 = vrot.slane %v2088, %v2092
        %v2111 = vunpack.c.l.b16 %v2072
        %v2112 = vunpack.c.l.b16 %v2073
        %v2113 = vunpack.c.l.b16 %v2074
        %v2114 = vunpack.c.l.b16 %v2075
        %v2115 = vunpack.c.l.b16 %v2076
        %v2116 = vunpack.c.l.b16 %v2077
        %v2117 = vunpack.c.l.b16 %v2078
        %v2118 = vunpack.c.l.b16 %v2079
        %v2119 = vunpack.c.l.b16 %v2080
        %v2120 = vunpack.c.l.b16 %v2081
        %v2121 = vunpack.c.l.b16 %v2082
        %v2122 = vunpack.c.l.b16 %v2083
        %v2123 = vunpack.c.l.b16 %v2084
        %v2124 = vunpack.c.l.b16 %v2085
        %v2125 = vunpack.c.l.b16 %v2086
        %v2126 = vunpack.c.l.b16 %v2087
        %v2127 = vpack.c.b16 %v2112, %v2111
        %v2128 = vpack.c.b16 %v2114, %v2113
        %v2129 = vpack.c.b16 %v2116, %v2115
        %v2130 = vpack.c.b16 %v2118, %v2117
        %v2131 = vpack.c.b16 %v2120, %v2119
        %v2132 = vpack.c.b16 %v2122, %v2121
        %v2133 = vpack.c.b16 %v2124, %v2123
        %v2134 = vpack.c.b16 %v2126, %v2125
        %2143 = vmatprep.subr.bf16.mxu0 0
        %2144 = vmatpush1.bf16.msra.mxu0 %v2127
        %2145 = vmatprep.subr.bf16.mxu0 0
        %2146 = vmatpush1.bf16.msra.mxu0 %v2128
        %2147 = vmatprep.subr.bf16.mxu0 0
        %2148 = vmatpush1.bf16.msra.mxu0 %v2129
        %2149 = vmatprep.subr.bf16.mxu0 0
        %2150 = vmatpush1.bf16.msra.mxu0 %v2130
        %2151 = vmatprep.subr.bf16.mxu0 0
        %2152 = vmatpush1.bf16.msra.mxu0 %v2131
        %2153 = vmatprep.subr.bf16.mxu0 0
        %2154 = vmatpush1.bf16.msra.mxu0 %v2132
        %2155 = vmatprep.subr.bf16.mxu0 0
        %2156 = vmatpush1.bf16.msra.mxu0 %v2133
        %2157 = vmatprep.subr.bf16.mxu0 0
        %2158 = vmatpush1.bf16.msra.mxu0 %v2134
        %2159 = vmatprep.subr.bf16.mxu0 0
        %2160 = vmatpush1.bf16.msra.mxu0 0
        %2161 = vmatprep.subr.bf16.mxu0 0
        %2162 = vmatpush1.bf16.msra.mxu0 0
        %2163 = vmatprep.subr.bf16.mxu0 0
        %2164 = vmatpush1.bf16.msra.mxu0 0
        %2165 = vmatprep.subr.bf16.mxu0 0
        %2166 = vmatpush1.bf16.msra.mxu0 0
        %2167 = vmatprep.subr.bf16.mxu0 0
        %2168 = vmatpush1.bf16.msra.mxu0 0
        %2169 = vmatprep.subr.bf16.mxu0 0
        %2170 = vmatpush1.bf16.msra.mxu0 0
        %2171 = vmatprep.subr.bf16.mxu0 0
        %2172 = vmatpush1.bf16.msra.mxu0 0
        %2173 = vmatprep.subr.bf16.mxu0 0
        %2174 = vmatpush1.bf16.msra.mxu0 0
        %2175 = vmatprep.mubr.bf16.mxu0 0
        %2176 = vmatmul.mubr.bf16.gmra.mrb[0].mxu0 %v2071
        %v2177 = vpop.f32.mrb[0].mxu0
        %v2178 = vadd.f32 %v2093, %v2177
        %v2179 = vpop.f32.mrb[0].mxu0
        %v2180 = vpop.f32.mrb[0].mxu0
        %v2181 = vpop.f32.mrb[0].mxu0
        %2182 = vdwg.mxu0
        %2183 = vst [vmem:[%s268] sm:$0xff] %v2178
        %p2184 = scmp.lt.s32.totalorder %s20, 1
        %s2185 = scalar_select %p2184, %s20, 1
        %s2186 = smul.addr %s2185, 8
        %s2187 = scalar_lea.vmem %s5, %s2186
        // Predicated region
        $region53: #{textcnn_forward.1} parent=39 // pred_check
          %p2188 = pneg %p148
        $region54: #{textcnn_forward.1} parent=39 // pred_check_branch
          %2190 = sbr.rel (%p2188) target = $region56
        $region55: #{textcnn_forward.1} parent=39 // pred_region
          _
        $region56: #{textcnn_forward.1} parent=39 // pred_fallthru
          _
      $region40: #{textcnn_forward.1} parent=5 // pred_fallthru
        _
      %p2191 = scmp.le.s32.totalorder 2, %s15
      // Predicated region
      $region57: #{textcnn_forward.1} parent=5 // pred_check
        %p2192 = pneg %p2191
      $region58: #{textcnn_forward.1} parent=5 // pred_check_branch
        %2194 = sbr.rel (%p2192) target = $region60
      $region59: #{textcnn_forward.1} parent=5 // pred_region
        %s2195 = ssub.s32 %s15, 2
        // Predicated region
        $region61: #{textcnn_forward.1} parent=59 // pred_check
          %p2196 = pneg %p154
        $region62: #{textcnn_forward.1} parent=59 // pred_check_branch
          %2198 = sbr.rel (%p2196) target = $region64
        $region63: #{textcnn_forward.1} parent=59 // pred_region
          %p2199 = scmp.lt.s32.totalorder %s21, 1
          %s2200 = scalar_select %p2199, %s21, 1
          %s2201 = smul.addr %s2200, 8
          %s2202 = scalar_lea.vmem %s5, %s2201
        $region64: #{textcnn_forward.1} parent=59 // pred_fallthru
          _
      $region60: #{textcnn_forward.1} parent=5 // pred_fallthru
        _
    $region6: #{textcnn_forward.1} parent=1 // loop_footer
      %s19 = sadd.s32 1, %s15
    $region7: #{textcnn_forward.1} parent=1 // loop_footer_branch
      %14 = sbr.rel target = $region3
    $region8: #{textcnn_forward.1} parent=1 // loop_exit
      _
    %2203 = vsyncpa [#allocation3], 1
    %s2204 = scalar_lea.sflag [#allocation3], 1
    %2205 = vsyncpa %s2204, 1
    %2206 = vsyncpa [#allocation5], 1

</llo_original>
